<compile_context>
chip_gen: v7x
topology: tpu7x:2x2x1
jax: 0.10.0
libtpu: 0.0.40
codegen_flags: <defaults>
</compile_context>

<pallas_src>
import functools

import jax
import jax.numpy as jnp
from jax.experimental import pallas as pl
from jax.experimental.pallas import tpu as pltpu


def _attblock_kernel(x_ref, w_ref, b_ref, pooled_ref, natt_ref, cla_ref, *,
                     c_out, b_blk, activation, compute_dtype):
    """One grid step: b_blk batch elements, kept in native (b, C, T) layout.

    x_ref:      (b_blk, C_in, T)    input slab (lane axis = T)
    w_ref:      (2*C_out, C_in)     fused [W_att; W_cla] in compute_dtype
    b_ref:      (2*C_out, 1)        fused bias, f32 (added in f32 post-matmul)
    pooled_ref: (b_blk, C_out, 1)   attention-pooled output (f32)
    natt_ref:   (b_blk, C_out, T)   softmax(tanh(att)), native layout
    cla_ref:    (b_blk, C_out, T)   (activated) cla, native layout
    """
    t = x_ref.shape[-1]
    w = w_ref[...]                                            # (2C, C_in)
    # Hoisted broadcast (JAX does not CSE broadcast_in_dim inside the loop).
    bias = jnp.broadcast_to(b_ref[...], (2 * c_out, t))       # (2C, T) f32

    for b in range(b_blk):                                    # small static unroll
        xb = x_ref[b].astype(compute_dtype)                   # (C_in, T)
        # Single fused MXU matmul for both 1x1 convs, f32 accumulation,
        # followed by the f32 bias add.
        y = jnp.dot(w, xb, preferred_element_type=jnp.float32) + bias
        att = jnp.tanh(y[:c_out, :])                          # (C_out, T) f32
        cla = y[c_out:, :]
        if activation == 'sigmoid':
            cla = jax.nn.sigmoid(cla)
        # Softmax over T: tanh() lies in [-1, 1] so exp() is stable without
        # max-subtraction (identical math to torch.softmax(torch.tanh(.))).
        e = jnp.exp(att)                                      # (C_out, T)
        denom = jnp.sum(e, axis=-1, keepdims=True)            # (C_out, 1)  XLU
        recip = pl.reciprocal(denom, approx=True)             # EUP slot
        recip = recip * (2.0 - denom * recip)                 # one NR step -> ~exact
        natt_ref[b] = (e * recip).astype(natt_ref.dtype)      # native-layout store
        cla_ref[b] = cla.astype(cla_ref.dtype)
        # pooled = sum_T(norm_att * cla) = (sum_T e*cla) * recip  (reuse e, recip)
        pooled_ref[b] = jnp.sum(e * cla, axis=-1, keepdims=True) * recip


def att_block_v2(x, w_att, b_att, w_cla, b_cla, activation='linear',
                 compute_dtype=jnp.bfloat16, out_dtype=jnp.float32):
    """AttBlockV2 forward.  x: (B, C_in, T); w_*: (C_out, C_in); b_*: (C_out,).

    Returns (pooled (B, C_out) f32, norm_att (B, C_out, T), cla (B, C_out, T)).

    compute_dtype: MXU matmul input dtype (bf16 default; accumulation and all
      elementwise math stay f32, the bias add is f32).  Pass x already in bf16
      to also halve its input DMA bytes.
    out_dtype: dtype of norm_att / cla (bf16 halves the dominant HBM store
      traffic if downstream accepts it).
    """
    B, C_in, T = x.shape
    C_out = w_att.shape[0]

    # Fused conv weights (one MXU matmul for both 1x1 convs); bias stays f32.
    w_cat = jnp.concatenate([w_att, w_cla], axis=0).astype(compute_dtype)
    b_cat = jnp.concatenate([b_att, b_cla], axis=0)[:, None].astype(jnp.float32)

    # ---- generation-aware VMEM budget --------------------------------------
    try:
        vmem_cap = pltpu.get_tpu_info().vmem_capacity_bytes
    except Exception:
        vmem_cap = 64 * 1024 * 1024                      # conservative (v7x)
    vmem_limit = int(min(max(vmem_cap - 16 * 1024 * 1024, 32 * 1024 * 1024),
                         100 * 1024 * 1024))
    budget = int(vmem_limit * 0.8)

    x_isz = jnp.dtype(x.dtype).itemsize
    o_isz = jnp.dtype(out_dtype).itemsize
    w_bytes = 2 * C_out * C_in * jnp.dtype(compute_dtype).itemsize  # 1 buffer

    def vmem_use(b_blk):
        return (2 * b_blk * C_in * T * x_isz              # x tile, double-buffered
                + 2 * 2 * b_blk * C_out * T * o_isz       # natt + cla, 2-deep
                + 2 * b_blk * C_out * 4                   # pooled tile
                + w_bytes + 2 * 2 * C_out * 4             # weights + bias
                + 8 * 2 * C_out * T * 4)                  # per-batch f32 temps

    # Largest divisor of B that fits the budget, keeping >= 2 grid steps when
    # B >= 2 (both v7x TensorCores get work, pipeline has something to overlap).
    b_blk = 1
    for cand in range(1, B + 1):
        if B % cand:
            continue
        if B >= 2 and B // cand < 2:
            continue
        if vmem_use(cand) > budget:
            continue
        b_blk = cand
    n_steps = B // b_blk
    # TODO(synk): if even b_blk == 1 exceeds the budget (very large C_in * T),
    # tile the time axis with an online-softmax (running-sum) accumulator.

    kernel = functools.partial(_attblock_kernel, c_out=C_out, b_blk=b_blk,
                               activation=activation, compute_dtype=compute_dtype)

    out_shapes = (
        jax.ShapeDtypeStruct((B, C_out, 1), jnp.float32),    # pooled (trailing 1)
        jax.ShapeDtypeStruct((B, C_out, T), out_dtype),      # norm_att (native)
        jax.ShapeDtypeStruct((B, C_out, T), out_dtype),      # cla      (native)
    )
    out_specs = [
        pl.BlockSpec((b_blk, C_out, 1), lambda i: (i, 0, 0)),
        pl.BlockSpec((b_blk, C_out, T), lambda i: (i, 0, 0)),
        pl.BlockSpec((b_blk, C_out, T), lambda i: (i, 0, 0)),
    ]

    def run(single_buffer_invariants):
        # Grid-invariant inputs (weights, bias) only need one VMEM buffer.
        extra = ({'pipeline_mode': pl.Buffered(1)}
                 if single_buffer_invariants else {})
        in_specs = [
            pl.BlockSpec((b_blk, C_in, T), lambda i: (i, 0, 0)),   # native x
            pl.BlockSpec((2 * C_out, C_in), lambda i: (0, 0), **extra),
            pl.BlockSpec((2 * C_out, 1), lambda i: (0, 0), **extra),
        ]
        return pl.pallas_call(
            kernel,
            out_shape=out_shapes,
            grid_spec=pltpu.PrefetchScalarGridSpec(
                num_scalar_prefetch=0,
                grid=(n_steps,),
                in_specs=in_specs,
                out_specs=out_specs),
            compiler_params=pltpu.CompilerParams(
                dimension_semantics=("parallel",),
                vmem_limit_bytes=vmem_limit),
        )(x, w_cat, b_cat)

    try:
        pooled3, natt, cla = run(True)
    except Exception:
        # pipeline_mode=pl.Buffered(1) unsupported -> default 2-deep buffering.
        pooled3, natt, cla = run(False)

    pooled = pooled3.reshape(B, C_out)      # tiny array; contiguous reshape
    return pooled, natt, cla


def _xavier_uniform(key, out_features, in_features):
    # Conv1d weight (out, in, 1): fan_in = in, fan_out = out.
    bound = (6.0 / (in_features + out_features)) ** 0.5
    return jax.random.uniform(key, (out_features, in_features),
                              minval=-bound, maxval=bound, dtype=jnp.float32)


def reference_att_block(x, w_att, b_att, w_cla, b_cla, activation='linear'):
    # Plain-JAX reference (high-precision) for sanity checking.
    att = (jnp.einsum('oc,bct->bot', w_att, x, precision='highest')
           + b_att[None, :, None])
    norm_att = jax.nn.softmax(jnp.tanh(att), axis=-1)
    cla = (jnp.einsum('oc,bct->bot', w_cla, x, precision='highest')
           + b_cla[None, :, None])
    if activation == 'sigmoid':
        cla = jax.nn.sigmoid(cla)
    pooled = jnp.sum(norm_att * cla, axis=2)
    return pooled, norm_att, cla


if __name__ == "__main__":
    # Small shapes: B=12 gives b_blk=6 (largest divisor keeping >=2 grid steps)
    # and a 2-step grid; C_out=8 keeps the att/cla row split sublane-aligned.
    B, C_in, C_out, T = 12, 32, 8, 16

    key = jax.random.PRNGKey(0)
    kx, ka, kc, kba, kbc = jax.random.split(key, 5)
    x = jax.random.normal(kx, (B, C_in, T), dtype=jnp.float32)
    w_att = _xavier_uniform(ka, C_out, C_in)
    w_cla = _xavier_uniform(kc, C_out, C_in)
    # init_layer zero-inits biases; use small nonzero values here to also
    # exercise the in-kernel f32 bias-add path (as after training).
    b_att = 0.1 * jax.random.normal(kba, (C_out,), dtype=jnp.float32)
    b_cla = 0.1 * jax.random.normal(kbc, (C_out,), dtype=jnp.float32)

    for activation in ('sigmoid', 'linear'):
        r_pooled, r_natt, r_cla = reference_att_block(
            x, w_att, b_att, w_cla, b_cla, activation=activation)

        # float32 matmul path.
        pooled, natt, cla = att_block_v2(x, w_att, b_att, w_cla, b_cla,
                                         activation=activation,
                                         compute_dtype=jnp.float32)
        jax.block_until_ready((pooled, natt, cla))
        assert pooled.shape == (B, C_out) and natt.shape == (B, C_out, T)
        assert jnp.allclose(cla, r_cla, atol=1e-4, rtol=1e-4)
        assert jnp.allclose(natt, r_natt, atol=1e-4, rtol=1e-4)
        assert jnp.allclose(pooled, r_pooled, atol=1e-4, rtol=1e-4)

        # bfloat16 matmul path (default; preferred on v5e/v6e/v7x).
        pooled, natt, cla = att_block_v2(x, w_att, b_att, w_cla, b_cla,
                                         activation=activation)
        jax.block_until_ready((pooled, natt, cla))
        assert jnp.allclose(cla, r_cla, atol=5e-2, rtol=5e-2)
        assert jnp.allclose(natt, r_natt, atol=5e-2, rtol=5e-2)
        assert jnp.allclose(pooled, r_pooled, atol=5e-2, rtol=5e-2)

    print("KERNEL_OK")
</pallas_src>

<mosaic_0001>
module attributes {stable_mosaic.version = 11 : i64} {
  func.func @_attblock_kernel(%arg0: i32, %arg1: memref<6x32x16xf32, #tpu.memory_space<vmem>>, %arg2: memref<16x32xf32, #tpu.memory_space<vmem>>, %arg3: memref<16x1xf32, #tpu.memory_space<vmem>>, %arg4: memref<6x8x1xf32, #tpu.memory_space<vmem>>, %arg5: memref<6x8x16xf32, #tpu.memory_space<vmem>>, %arg6: memref<6x8x16xf32, #tpu.memory_space<vmem>>) attributes {dimension_semantics = [#tpu.dimension_semantics<parallel>], iteration_bounds = array<i64: 2>, scalar_prefetch = 0 : i64, scratch_operands = 0 : i64, tpu.core_type = #tpu.core_type<tc>, window_params = [{transform_indices = @transform_0, window_bounds = array<i64: 6, 32, 16>}, {pipeline_mode = #tpu.pipeline_mode<synchronous>, transform_indices = @transform_1, window_bounds = array<i64: 16, 32>}, {pipeline_mode = #tpu.pipeline_mode<synchronous>, transform_indices = @transform_2, window_bounds = array<i64: 16, 1>}, {transform_indices = @transform_3, window_bounds = array<i64: 6, 8, 1>}, {transform_indices = @transform_4, window_bounds = array<i64: 6, 8, 16>}, {transform_indices = @transform_5, window_bounds = array<i64: 6, 8, 16>}]} {
    %c0 = arith.constant 0 : index
    %c0_0 = arith.constant 0 : index
    %0 = vector.load %arg2[%c0, %c0_0] : memref<16x32xf32, #tpu.memory_space<vmem>>, vector<16x32xf32>
    %c0_1 = arith.constant 0 : index
    %c0_2 = arith.constant 0 : index
    %1 = vector.load %arg3[%c0_1, %c0_2] : memref<16x1xf32, #tpu.memory_space<vmem>>, vector<16x1xf32>
    %2 = vector.shape_cast %1 : vector<16x1xf32> to vector<16x1xf32>
    %3 = vector.broadcast %2 : vector<16x1xf32> to vector<16x16xf32>
    %c0_3 = arith.constant 0 : index
    %c0_4 = arith.constant 0 : index
    %c0_5 = arith.constant 0 : index
    %4 = vector.load %arg1[%c0_3, %c0_4, %c0_5] : memref<6x32x16xf32, #tpu.memory_space<vmem>>, vector<1x32x16xf32>
    %5 = vector.shape_cast %4 : vector<1x32x16xf32> to vector<32x16xf32>
    %cst = arith.constant dense<0.000000e+00> : vector<16x16xf32>
    %6 = tpu.matmul %0, %5, %cst {dimension_numbers = #tpu.dot_dimension_numbers<[1], [0], [0], [1], [0, 0, 1, 1], [], []>} : vector<16x32xf32>, vector<32x16xf32>, vector<16x16xf32> -> vector<16x16xf32>
    %7 = arith.addf %6, %3 : vector<16x16xf32>
    %8 = vector.extract_strided_slice %7 {offsets = [0, 0], sizes = [8, 16], strides = [1, 1]} : vector<16x16xf32> to vector<8x16xf32>
    %9 = math.tanh %8 : vector<8x16xf32>
    %10 = vector.extract_strided_slice %7 {offsets = [8, 0], sizes = [8, 16], strides = [1, 1]} : vector<16x16xf32> to vector<8x16xf32>
    %11 = arith.negf %10 : vector<8x16xf32>
    %12 = math.exp %11 : vector<8x16xf32>
    %cst_6 = arith.constant 1.000000e+00 : f32
    %13 = vector.broadcast %cst_6 : f32 to vector<8x16xf32>
    %14 = arith.addf %13, %12 : vector<8x16xf32>
    %15 = arith.divf %13, %14 : vector<8x16xf32>
    %16 = math.exp %9 : vector<8x16xf32>
    %cst_7 = arith.constant dense<0.000000e+00> : vector<8xf32>
    %17 = vector.multi_reduction <add>, %16, %cst_7 [1] : vector<8x16xf32> to vector<8xf32>
    %18 = vector.shape_cast %17 : vector<8xf32> to vector<8x1xf32>
    %19 = tpu.reciprocal %18 {approx = true} : vector<8x1xf32> -> vector<8x1xf32>
    %20 = arith.mulf %18, %19 : vector<8x1xf32>
    %cst_8 = arith.constant 2.000000e+00 : f32
    %21 = vector.broadcast %cst_8 : f32 to vector<8x1xf32>
    %22 = arith.subf %21, %20 : vector<8x1xf32>
    %23 = arith.mulf %19, %22 : vector<8x1xf32>
    %24 = vector.broadcast %23 : vector<8x1xf32> to vector<8x16xf32>
    %25 = arith.mulf %16, %24 : vector<8x16xf32>
    %c0_9 = arith.constant 0 : index
    %c0_10 = arith.constant 0 : index
    %c0_11 = arith.constant 0 : index
    %26 = vector.load %arg5[%c0_9, %c0_10, %c0_11] : memref<6x8x16xf32, #tpu.memory_space<vmem>>, vector<1x8x16xf32>
    %27 = vector.shape_cast %26 : vector<1x8x16xf32> to vector<8x16xf32>
    %28 = vector.shape_cast %25 : vector<8x16xf32> to vector<1x8x16xf32>
    tpu.vector_store %arg5[%c0_9, %c0_10, %c0_11], %28 {strides = array<i32>} : memref<6x8x16xf32, #tpu.memory_space<vmem>>, vector<1x8x16xf32>,
    %c0_12 = arith.constant 0 : index
    %c0_13 = arith.constant 0 : index
    %c0_14 = arith.constant 0 : index
    %29 = vector.load %arg6[%c0_12, %c0_13, %c0_14] : memref<6x8x16xf32, #tpu.memory_space<vmem>>, vector<1x8x16xf32>
    %30 = vector.shape_cast %29 : vector<1x8x16xf32> to vector<8x16xf32>
    %31 = vector.shape_cast %15 : vector<8x16xf32> to vector<1x8x16xf32>
    tpu.vector_store %arg6[%c0_12, %c0_13, %c0_14], %31 {strides = array<i32>} : memref<6x8x16xf32, #tpu.memory_space<vmem>>, vector<1x8x16xf32>,
    %32 = arith.mulf %16, %15 : vector<8x16xf32>
    %cst_15 = arith.constant dense<0.000000e+00> : vector<8xf32>
    %33 = vector.multi_reduction <add>, %32, %cst_15 [1] : vector<8x16xf32> to vector<8xf32>
    %34 = vector.shape_cast %33 : vector<8xf32> to vector<8x1xf32>
    %35 = arith.mulf %34, %23 : vector<8x1xf32>
    %c0_16 = arith.constant 0 : index
    %c0_17 = arith.constant 0 : index
    %c0_18 = arith.constant 0 : index
    %36 = vector.load %arg4[%c0_16, %c0_17, %c0_18] : memref<6x8x1xf32, #tpu.memory_space<vmem>>, vector<1x8x1xf32>
    %37 = vector.shape_cast %36 : vector<1x8x1xf32> to vector<8x1xf32>
    %38 = vector.shape_cast %35 : vector<8x1xf32> to vector<1x8x1xf32>
    tpu.vector_store %arg4[%c0_16, %c0_17, %c0_18], %38 {strides = array<i32>} : memref<6x8x1xf32, #tpu.memory_space<vmem>>, vector<1x8x1xf32>,
    %c1 = arith.constant 1 : index
    %c0_19 = arith.constant 0 : index
    %c0_20 = arith.constant 0 : index
    %39 = vector.load %arg1[%c1, %c0_19, %c0_20] : memref<6x32x16xf32, #tpu.memory_space<vmem>>, vector<1x32x16xf32>
    %40 = vector.shape_cast %39 : vector<1x32x16xf32> to vector<32x16xf32>
    %cst_21 = arith.constant dense<0.000000e+00> : vector<16x16xf32>
    %41 = tpu.matmul %0, %40, %cst_21 {dimension_numbers = #tpu.dot_dimension_numbers<[1], [0], [0], [1], [0, 0, 1, 1], [], []>} : vector<16x32xf32>, vector<32x16xf32>, vector<16x16xf32> -> vector<16x16xf32>
    %42 = arith.addf %41, %3 : vector<16x16xf32>
    %43 = vector.extract_strided_slice %42 {offsets = [0, 0], sizes = [8, 16], strides = [1, 1]} : vector<16x16xf32> to vector<8x16xf32>
    %44 = math.tanh %43 : vector<8x16xf32>
    %45 = vector.extract_strided_slice %42 {offsets = [8, 0], sizes = [8, 16], strides = [1, 1]} : vector<16x16xf32> to vector<8x16xf32>
    %46 = arith.negf %45 : vector<8x16xf32>
    %47 = math.exp %46 : vector<8x16xf32>
    %cst_22 = arith.constant 1.000000e+00 : f32
    %48 = vector.broadcast %cst_22 : f32 to vector<8x16xf32>
    %49 = arith.addf %48, %47 : vector<8x16xf32>
    %50 = arith.divf %48, %49 : vector<8x16xf32>
    %51 = math.exp %44 : vector<8x16xf32>
    %cst_23 = arith.constant dense<0.000000e+00> : vector<8xf32>
    %52 = vector.multi_reduction <add>, %51, %cst_23 [1] : vector<8x16xf32> to vector<8xf32>
    %53 = vector.shape_cast %52 : vector<8xf32> to vector<8x1xf32>
    %54 = tpu.reciprocal %53 {approx = true} : vector<8x1xf32> -> vector<8x1xf32>
    %55 = arith.mulf %53, %54 : vector<8x1xf32>
    %cst_24 = arith.constant 2.000000e+00 : f32
    %56 = vector.broadcast %cst_24 : f32 to vector<8x1xf32>
    %57 = arith.subf %56, %55 : vector<8x1xf32>
    %58 = arith.mulf %54, %57 : vector<8x1xf32>
    %59 = vector.broadcast %58 : vector<8x1xf32> to vector<8x16xf32>
    %60 = arith.mulf %51, %59 : vector<8x16xf32>
    %c1_25 = arith.constant 1 : index
    %c0_26 = arith.constant 0 : index
    %c0_27 = arith.constant 0 : index
    %61 = vector.load %arg5[%c1_25, %c0_26, %c0_27] : memref<6x8x16xf32, #tpu.memory_space<vmem>>, vector<1x8x16xf32>
    %62 = vector.shape_cast %61 : vector<1x8x16xf32> to vector<8x16xf32>
    %63 = vector.shape_cast %60 : vector<8x16xf32> to vector<1x8x16xf32>
    tpu.vector_store %arg5[%c1_25, %c0_26, %c0_27], %63 {strides = array<i32>} : memref<6x8x16xf32, #tpu.memory_space<vmem>>, vector<1x8x16xf32>,
    %c1_28 = arith.constant 1 : index
    %c0_29 = arith.constant 0 : index
    %c0_30 = arith.constant 0 : index
    %64 = vector.load %arg6[%c1_28, %c0_29, %c0_30] : memref<6x8x16xf32, #tpu.memory_space<vmem>>, vector<1x8x16xf32>
    %65 = vector.shape_cast %64 : vector<1x8x16xf32> to vector<8x16xf32>
    %66 = vector.shape_cast %50 : vector<8x16xf32> to vector<1x8x16xf32>
    tpu.vector_store %arg6[%c1_28, %c0_29, %c0_30], %66 {strides = array<i32>} : memref<6x8x16xf32, #tpu.memory_space<vmem>>, vector<1x8x16xf32>,
    %67 = arith.mulf %51, %50 : vector<8x16xf32>
    %cst_31 = arith.constant dense<0.000000e+00> : vector<8xf32>
    %68 = vector.multi_reduction <add>, %67, %cst_31 [1] : vector<8x16xf32> to vector<8xf32>
    %69 = vector.shape_cast %68 : vector<8xf32> to vector<8x1xf32>
    %70 = arith.mulf %69, %58 : vector<8x1xf32>
    %c1_32 = arith.constant 1 : index
    %c0_33 = arith.constant 0 : index
    %c0_34 = arith.constant 0 : index
    %71 = vector.load %arg4[%c1_32, %c0_33, %c0_34] : memref<6x8x1xf32, #tpu.memory_space<vmem>>, vector<1x8x1xf32>
    %72 = vector.shape_cast %71 : vector<1x8x1xf32> to vector<8x1xf32>
    %73 = vector.shape_cast %70 : vector<8x1xf32> to vector<1x8x1xf32>
    tpu.vector_store %arg4[%c1_32, %c0_33, %c0_34], %73 {strides = array<i32>} : memref<6x8x1xf32, #tpu.memory_space<vmem>>, vector<1x8x1xf32>,
    %c2 = arith.constant 2 : index
    %c0_35 = arith.constant 0 : index
    %c0_36 = arith.constant 0 : index
    %74 = vector.load %arg1[%c2, %c0_35, %c0_36] : memref<6x32x16xf32, #tpu.memory_space<vmem>>, vector<1x32x16xf32>
    %75 = vector.shape_cast %74 : vector<1x32x16xf32> to vector<32x16xf32>
    %cst_37 = arith.constant dense<0.000000e+00> : vector<16x16xf32>
    %76 = tpu.matmul %0, %75, %cst_37 {dimension_numbers = #tpu.dot_dimension_numbers<[1], [0], [0], [1], [0, 0, 1, 1], [], []>} : vector<16x32xf32>, vector<32x16xf32>, vector<16x16xf32> -> vector<16x16xf32>
    %77 = arith.addf %76, %3 : vector<16x16xf32>
    %78 = vector.extract_strided_slice %77 {offsets = [0, 0], sizes = [8, 16], strides = [1, 1]} : vector<16x16xf32> to vector<8x16xf32>
    %79 = math.tanh %78 : vector<8x16xf32>
    %80 = vector.extract_strided_slice %77 {offsets = [8, 0], sizes = [8, 16], strides = [1, 1]} : vector<16x16xf32> to vector<8x16xf32>
    %81 = arith.negf %80 : vector<8x16xf32>
    %82 = math.exp %81 : vector<8x16xf32>
    %cst_38 = arith.constant 1.000000e+00 : f32
    %83 = vector.broadcast %cst_38 : f32 to vector<8x16xf32>
    %84 = arith.addf %83, %82 : vector<8x16xf32>
    %85 = arith.divf %83, %84 : vector<8x16xf32>
    %86 = math.exp %79 : vector<8x16xf32>
    %cst_39 = arith.constant dense<0.000000e+00> : vector<8xf32>
    %87 = vector.multi_reduction <add>, %86, %cst_39 [1] : vector<8x16xf32> to vector<8xf32>
    %88 = vector.shape_cast %87 : vector<8xf32> to vector<8x1xf32>
    %89 = tpu.reciprocal %88 {approx = true} : vector<8x1xf32> -> vector<8x1xf32>
    %90 = arith.mulf %88, %89 : vector<8x1xf32>
    %cst_40 = arith.constant 2.000000e+00 : f32
    %91 = vector.broadcast %cst_40 : f32 to vector<8x1xf32>
    %92 = arith.subf %91, %90 : vector<8x1xf32>
    %93 = arith.mulf %89, %92 : vector<8x1xf32>
    %94 = vector.broadcast %93 : vector<8x1xf32> to vector<8x16xf32>
    %95 = arith.mulf %86, %94 : vector<8x16xf32>
    %c2_41 = arith.constant 2 : index
    %c0_42 = arith.constant 0 : index
    %c0_43 = arith.constant 0 : index
    %96 = vector.load %arg5[%c2_41, %c0_42, %c0_43] : memref<6x8x16xf32, #tpu.memory_space<vmem>>, vector<1x8x16xf32>
    %97 = vector.shape_cast %96 : vector<1x8x16xf32> to vector<8x16xf32>
    %98 = vector.shape_cast %95 : vector<8x16xf32> to vector<1x8x16xf32>
    tpu.vector_store %arg5[%c2_41, %c0_42, %c0_43], %98 {strides = array<i32>} : memref<6x8x16xf32, #tpu.memory_space<vmem>>, vector<1x8x16xf32>,
    %c2_44 = arith.constant 2 : index
    %c0_45 = arith.constant 0 : index
    %c0_46 = arith.constant 0 : index
    %99 = vector.load %arg6[%c2_44, %c0_45, %c0_46] : memref<6x8x16xf32, #tpu.memory_space<vmem>>, vector<1x8x16xf32>
    %100 = vector.shape_cast %99 : vector<1x8x16xf32> to vector<8x16xf32>
    %101 = vector.shape_cast %85 : vector<8x16xf32> to vector<1x8x16xf32>
    tpu.vector_store %arg6[%c2_44, %c0_45, %c0_46], %101 {strides = array<i32>} : memref<6x8x16xf32, #tpu.memory_space<vmem>>, vector<1x8x16xf32>,
    %102 = arith.mulf %86, %85 : vector<8x16xf32>
    %cst_47 = arith.constant dense<0.000000e+00> : vector<8xf32>
    %103 = vector.multi_reduction <add>, %102, %cst_47 [1] : vector<8x16xf32> to vector<8xf32>
    %104 = vector.shape_cast %103 : vector<8xf32> to vector<8x1xf32>
    %105 = arith.mulf %104, %93 : vector<8x1xf32>
    %c2_48 = arith.constant 2 : index
    %c0_49 = arith.constant 0 : index
    %c0_50 = arith.constant 0 : index
    %106 = vector.load %arg4[%c2_48, %c0_49, %c0_50] : memref<6x8x1xf32, #tpu.memory_space<vmem>>, vector<1x8x1xf32>
    %107 = vector.shape_cast %106 : vector<1x8x1xf32> to vector<8x1xf32>
    %108 = vector.shape_cast %105 : vector<8x1xf32> to vector<1x8x1xf32>
    tpu.vector_store %arg4[%c2_48, %c0_49, %c0_50], %108 {strides = array<i32>} : memref<6x8x1xf32, #tpu.memory_space<vmem>>, vector<1x8x1xf32>,
    %c3 = arith.constant 3 : index
    %c0_51 = arith.constant 0 : index
    %c0_52 = arith.constant 0 : index
    %109 = vector.load %arg1[%c3, %c0_51, %c0_52] : memref<6x32x16xf32, #tpu.memory_space<vmem>>, vector<1x32x16xf32>
    %110 = vector.shape_cast %109 : vector<1x32x16xf32> to vector<32x16xf32>
    %cst_53 = arith.constant dense<0.000000e+00> : vector<16x16xf32>
    %111 = tpu.matmul %0, %110, %cst_53 {dimension_numbers = #tpu.dot_dimension_numbers<[1], [0], [0], [1], [0, 0, 1, 1], [], []>} : vector<16x32xf32>, vector<32x16xf32>, vector<16x16xf32> -> vector<16x16xf32>
    %112 = arith.addf %111, %3 : vector<16x16xf32>
    %113 = vector.extract_strided_slice %112 {offsets = [0, 0], sizes = [8, 16], strides = [1, 1]} : vector<16x16xf32> to vector<8x16xf32>
    %114 = math.tanh %113 : vector<8x16xf32>
    %115 = vector.extract_strided_slice %112 {offsets = [8, 0], sizes = [8, 16], strides = [1, 1]} : vector<16x16xf32> to vector<8x16xf32>
    %116 = arith.negf %115 : vector<8x16xf32>
    %117 = math.exp %116 : vector<8x16xf32>
    %cst_54 = arith.constant 1.000000e+00 : f32
    %118 = vector.broadcast %cst_54 : f32 to vector<8x16xf32>
    %119 = arith.addf %118, %117 : vector<8x16xf32>
    %120 = arith.divf %118, %119 : vector<8x16xf32>
    %121 = math.exp %114 : vector<8x16xf32>
    %cst_55 = arith.constant dense<0.000000e+00> : vector<8xf32>
    %122 = vector.multi_reduction <add>, %121, %cst_55 [1] : vector<8x16xf32> to vector<8xf32>
    %123 = vector.shape_cast %122 : vector<8xf32> to vector<8x1xf32>
    %124 = tpu.reciprocal %123 {approx = true} : vector<8x1xf32> -> vector<8x1xf32>
    %125 = arith.mulf %123, %124 : vector<8x1xf32>
    %cst_56 = arith.constant 2.000000e+00 : f32
    %126 = vector.broadcast %cst_56 : f32 to vector<8x1xf32>
    %127 = arith.subf %126, %125 : vector<8x1xf32>
    %128 = arith.mulf %124, %127 : vector<8x1xf32>
    %129 = vector.broadcast %128 : vector<8x1xf32> to vector<8x16xf32>
    %130 = arith.mulf %121, %129 : vector<8x16xf32>
    %c3_57 = arith.constant 3 : index
    %c0_58 = arith.constant 0 : index
    %c0_59 = arith.constant 0 : index
    %131 = vector.load %arg5[%c3_57, %c0_58, %c0_59] : memref<6x8x16xf32, #tpu.memory_space<vmem>>, vector<1x8x16xf32>
    %132 = vector.shape_cast %131 : vector<1x8x16xf32> to vector<8x16xf32>
    %133 = vector.shape_cast %130 : vector<8x16xf32> to vector<1x8x16xf32>
    tpu.vector_store %arg5[%c3_57, %c0_58, %c0_59], %133 {strides = array<i32>} : memref<6x8x16xf32, #tpu.memory_space<vmem>>, vector<1x8x16xf32>,
    %c3_60 = arith.constant 3 : index
    %c0_61 = arith.constant 0 : index
    %c0_62 = arith.constant 0 : index
    %134 = vector.load %arg6[%c3_60, %c0_61, %c0_62] : memref<6x8x16xf32, #tpu.memory_space<vmem>>, vector<1x8x16xf32>
    %135 = vector.shape_cast %134 : vector<1x8x16xf32> to vector<8x16xf32>
    %136 = vector.shape_cast %120 : vector<8x16xf32> to vector<1x8x16xf32>
    tpu.vector_store %arg6[%c3_60, %c0_61, %c0_62], %136 {strides = array<i32>} : memref<6x8x16xf32, #tpu.memory_space<vmem>>, vector<1x8x16xf32>,
    %137 = arith.mulf %121, %120 : vector<8x16xf32>
    %cst_63 = arith.constant dense<0.000000e+00> : vector<8xf32>
    %138 = vector.multi_reduction <add>, %137, %cst_63 [1] : vector<8x16xf32> to vector<8xf32>
    %139 = vector.shape_cast %138 : vector<8xf32> to vector<8x1xf32>
    %140 = arith.mulf %139, %128 : vector<8x1xf32>
    %c3_64 = arith.constant 3 : index
    %c0_65 = arith.constant 0 : index
    %c0_66 = arith.constant 0 : index
    %141 = vector.load %arg4[%c3_64, %c0_65, %c0_66] : memref<6x8x1xf32, #tpu.memory_space<vmem>>, vector<1x8x1xf32>
    %142 = vector.shape_cast %141 : vector<1x8x1xf32> to vector<8x1xf32>
    %143 = vector.shape_cast %140 : vector<8x1xf32> to vector<1x8x1xf32>
    tpu.vector_store %arg4[%c3_64, %c0_65, %c0_66], %143 {strides = array<i32>} : memref<6x8x1xf32, #tpu.memory_space<vmem>>, vector<1x8x1xf32>,
    %c4 = arith.constant 4 : index
    %c0_67 = arith.constant 0 : index
    %c0_68 = arith.constant 0 : index
    %144 = vector.load %arg1[%c4, %c0_67, %c0_68] : memref<6x32x16xf32, #tpu.memory_space<vmem>>, vector<1x32x16xf32>
    %145 = vector.shape_cast %144 : vector<1x32x16xf32> to vector<32x16xf32>
    %cst_69 = arith.constant dense<0.000000e+00> : vector<16x16xf32>
    %146 = tpu.matmul %0, %145, %cst_69 {dimension_numbers = #tpu.dot_dimension_numbers<[1], [0], [0], [1], [0, 0, 1, 1], [], []>} : vector<16x32xf32>, vector<32x16xf32>, vector<16x16xf32> -> vector<16x16xf32>
    %147 = arith.addf %146, %3 : vector<16x16xf32>
    %148 = vector.extract_strided_slice %147 {offsets = [0, 0], sizes = [8, 16], strides = [1, 1]} : vector<16x16xf32> to vector<8x16xf32>
    %149 = math.tanh %148 : vector<8x16xf32>
    %150 = vector.extract_strided_slice %147 {offsets = [8, 0], sizes = [8, 16], strides = [1, 1]} : vector<16x16xf32> to vector<8x16xf32>
    %151 = arith.negf %150 : vector<8x16xf32>
    %152 = math.exp %151 : vector<8x16xf32>
    %cst_70 = arith.constant 1.000000e+00 : f32
    %153 = vector.broadcast %cst_70 : f32 to vector<8x16xf32>
    %154 = arith.addf %153, %152 : vector<8x16xf32>
    %155 = arith.divf %153, %154 : vector<8x16xf32>
    %156 = math.exp %149 : vector<8x16xf32>
    %cst_71 = arith.constant dense<0.000000e+00> : vector<8xf32>
    %157 = vector.multi_reduction <add>, %156, %cst_71 [1] : vector<8x16xf32> to vector<8xf32>
    %158 = vector.shape_cast %157 : vector<8xf32> to vector<8x1xf32>
    %159 = tpu.reciprocal %158 {approx = true} : vector<8x1xf32> -> vector<8x1xf32>
    %160 = arith.mulf %158, %159 : vector<8x1xf32>
    %cst_72 = arith.constant 2.000000e+00 : f32
    %161 = vector.broadcast %cst_72 : f32 to vector<8x1xf32>
    %162 = arith.subf %161, %160 : vector<8x1xf32>
    %163 = arith.mulf %159, %162 : vector<8x1xf32>
    %164 = vector.broadcast %163 : vector<8x1xf32> to vector<8x16xf32>
    %165 = arith.mulf %156, %164 : vector<8x16xf32>
    %c4_73 = arith.constant 4 : index
    %c0_74 = arith.constant 0 : index
    %c0_75 = arith.constant 0 : index
    %166 = vector.load %arg5[%c4_73, %c0_74, %c0_75] : memref<6x8x16xf32, #tpu.memory_space<vmem>>, vector<1x8x16xf32>
    %167 = vector.shape_cast %166 : vector<1x8x16xf32> to vector<8x16xf32>
    %168 = vector.shape_cast %165 : vector<8x16xf32> to vector<1x8x16xf32>
    tpu.vector_store %arg5[%c4_73, %c0_74, %c0_75], %168 {strides = array<i32>} : memref<6x8x16xf32, #tpu.memory_space<vmem>>, vector<1x8x16xf32>,
    %c4_76 = arith.constant 4 : index
    %c0_77 = arith.constant 0 : index
    %c0_78 = arith.constant 0 : index
    %169 = vector.load %arg6[%c4_76, %c0_77, %c0_78] : memref<6x8x16xf32, #tpu.memory_space<vmem>>, vector<1x8x16xf32>
    %170 = vector.shape_cast %169 : vector<1x8x16xf32> to vector<8x16xf32>
    %171 = vector.shape_cast %155 : vector<8x16xf32> to vector<1x8x16xf32>
    tpu.vector_store %arg6[%c4_76, %c0_77, %c0_78], %171 {strides = array<i32>} : memref<6x8x16xf32, #tpu.memory_space<vmem>>, vector<1x8x16xf32>,
    %172 = arith.mulf %156, %155 : vector<8x16xf32>
    %cst_79 = arith.constant dense<0.000000e+00> : vector<8xf32>
    %173 = vector.multi_reduction <add>, %172, %cst_79 [1] : vector<8x16xf32> to vector<8xf32>
    %174 = vector.shape_cast %173 : vector<8xf32> to vector<8x1xf32>
    %175 = arith.mulf %174, %163 : vector<8x1xf32>
    %c4_80 = arith.constant 4 : index
    %c0_81 = arith.constant 0 : index
    %c0_82 = arith.constant 0 : index
    %176 = vector.load %arg4[%c4_80, %c0_81, %c0_82] : memref<6x8x1xf32, #tpu.memory_space<vmem>>, vector<1x8x1xf32>
    %177 = vector.shape_cast %176 : vector<1x8x1xf32> to vector<8x1xf32>
    %178 = vector.shape_cast %175 : vector<8x1xf32> to vector<1x8x1xf32>
    tpu.vector_store %arg4[%c4_80, %c0_81, %c0_82], %178 {strides = array<i32>} : memref<6x8x1xf32, #tpu.memory_space<vmem>>, vector<1x8x1xf32>,
    %c5 = arith.constant 5 : index
    %c0_83 = arith.constant 0 : index
    %c0_84 = arith.constant 0 : index
    %179 = vector.load %arg1[%c5, %c0_83, %c0_84] : memref<6x32x16xf32, #tpu.memory_space<vmem>>, vector<1x32x16xf32>
    %180 = vector.shape_cast %179 : vector<1x32x16xf32> to vector<32x16xf32>
    %cst_85 = arith.constant dense<0.000000e+00> : vector<16x16xf32>
    %181 = tpu.matmul %0, %180, %cst_85 {dimension_numbers = #tpu.dot_dimension_numbers<[1], [0], [0], [1], [0, 0, 1, 1], [], []>} : vector<16x32xf32>, vector<32x16xf32>, vector<16x16xf32> -> vector<16x16xf32>
    %182 = arith.addf %181, %3 : vector<16x16xf32>
    %183 = vector.extract_strided_slice %182 {offsets = [0, 0], sizes = [8, 16], strides = [1, 1]} : vector<16x16xf32> to vector<8x16xf32>
    %184 = math.tanh %183 : vector<8x16xf32>
    %185 = vector.extract_strided_slice %182 {offsets = [8, 0], sizes = [8, 16], strides = [1, 1]} : vector<16x16xf32> to vector<8x16xf32>
    %186 = arith.negf %185 : vector<8x16xf32>
    %187 = math.exp %186 : vector<8x16xf32>
    %cst_86 = arith.constant 1.000000e+00 : f32
    %188 = vector.broadcast %cst_86 : f32 to vector<8x16xf32>
    %189 = arith.addf %188, %187 : vector<8x16xf32>
    %190 = arith.divf %188, %189 : vector<8x16xf32>
    %191 = math.exp %184 : vector<8x16xf32>
    %cst_87 = arith.constant dense<0.000000e+00> : vector<8xf32>
    %192 = vector.multi_reduction <add>, %191, %cst_87 [1] : vector<8x16xf32> to vector<8xf32>
    %193 = vector.shape_cast %192 : vector<8xf32> to vector<8x1xf32>
    %194 = tpu.reciprocal %193 {approx = true} : vector<8x1xf32> -> vector<8x1xf32>
    %195 = arith.mulf %193, %194 : vector<8x1xf32>
    %cst_88 = arith.constant 2.000000e+00 : f32
    %196 = vector.broadcast %cst_88 : f32 to vector<8x1xf32>
    %197 = arith.subf %196, %195 : vector<8x1xf32>
    %198 = arith.mulf %194, %197 : vector<8x1xf32>
    %199 = vector.broadcast %198 : vector<8x1xf32> to vector<8x16xf32>
    %200 = arith.mulf %191, %199 : vector<8x16xf32>
    %c5_89 = arith.constant 5 : index
    %c0_90 = arith.constant 0 : index
    %c0_91 = arith.constant 0 : index
    %201 = vector.load %arg5[%c5_89, %c0_90, %c0_91] : memref<6x8x16xf32, #tpu.memory_space<vmem>>, vector<1x8x16xf32>
    %202 = vector.shape_cast %201 : vector<1x8x16xf32> to vector<8x16xf32>
    %203 = vector.shape_cast %200 : vector<8x16xf32> to vector<1x8x16xf32>
    tpu.vector_store %arg5[%c5_89, %c0_90, %c0_91], %203 {strides = array<i32>} : memref<6x8x16xf32, #tpu.memory_space<vmem>>, vector<1x8x16xf32>,
    %c5_92 = arith.constant 5 : index
    %c0_93 = arith.constant 0 : index
    %c0_94 = arith.constant 0 : index
    %204 = vector.load %arg6[%c5_92, %c0_93, %c0_94] : memref<6x8x16xf32, #tpu.memory_space<vmem>>, vector<1x8x16xf32>
    %205 = vector.shape_cast %204 : vector<1x8x16xf32> to vector<8x16xf32>
    %206 = vector.shape_cast %190 : vector<8x16xf32> to vector<1x8x16xf32>
    tpu.vector_store %arg6[%c5_92, %c0_93, %c0_94], %206 {strides = array<i32>} : memref<6x8x16xf32, #tpu.memory_space<vmem>>, vector<1x8x16xf32>,
    %207 = arith.mulf %191, %190 : vector<8x16xf32>
    %cst_95 = arith.constant dense<0.000000e+00> : vector<8xf32>
    %208 = vector.multi_reduction <add>, %207, %cst_95 [1] : vector<8x16xf32> to vector<8xf32>
    %209 = vector.shape_cast %208 : vector<8xf32> to vector<8x1xf32>
    %210 = arith.mulf %209, %198 : vector<8x1xf32>
    %c5_96 = arith.constant 5 : index
    %c0_97 = arith.constant 0 : index
    %c0_98 = arith.constant 0 : index
    %211 = vector.load %arg4[%c5_96, %c0_97, %c0_98] : memref<6x8x1xf32, #tpu.memory_space<vmem>>, vector<1x8x1xf32>
    %212 = vector.shape_cast %211 : vector<1x8x1xf32> to vector<8x1xf32>
    %213 = vector.shape_cast %210 : vector<8x1xf32> to vector<1x8x1xf32>
    tpu.vector_store %arg4[%c5_96, %c0_97, %c0_98], %213 {strides = array<i32>} : memref<6x8x1xf32, #tpu.memory_space<vmem>>, vector<1x8x1xf32>,
    return
  }
  func.func @transform_0(%arg0: i32) -> (i32, i32, i32) {
    %c0_i32 = arith.constant 0 : i32
    %c0_i32_0 = arith.constant 0 : i32
    %c0_i32_1 = arith.constant 0 : i32
    return %arg0, %c0_i32, %c0_i32_0 : i32, i32, i32
  }
  func.func @transform_1(%arg0: i32) -> (i32, i32) {
    %c0_i32 = arith.constant 0 : i32
    %c0_i32_0 = arith.constant 0 : i32
    %c0_i32_1 = arith.constant 0 : i32
    return %c0_i32, %c0_i32_0 : i32, i32
  }
  func.func @transform_2(%arg0: i32) -> (i32, i32) {
    %c0_i32 = arith.constant 0 : i32
    %c0_i32_0 = arith.constant 0 : i32
    %c0_i32_1 = arith.constant 0 : i32
    return %c0_i32, %c0_i32_0 : i32, i32
  }
  func.func @transform_3(%arg0: i32) -> (i32, i32, i32) {
    %c0_i32 = arith.constant 0 : i32
    %c0_i32_0 = arith.constant 0 : i32
    %c0_i32_1 = arith.constant 0 : i32
    return %arg0, %c0_i32, %c0_i32_0 : i32, i32, i32
  }
  func.func @transform_4(%arg0: i32) -> (i32, i32, i32) {
    %c0_i32 = arith.constant 0 : i32
    %c0_i32_0 = arith.constant 0 : i32
    %c0_i32_1 = arith.constant 0 : i32
    return %arg0, %c0_i32, %c0_i32_0 : i32, i32, i32
  }
  func.func @transform_5(%arg0: i32) -> (i32, i32, i32) {
    %c0_i32 = arith.constant 0 : i32
    %c0_i32_0 = arith.constant 0 : i32
    %c0_i32_1 = arith.constant 0 : i32
    return %arg0, %c0_i32, %c0_i32_0 : i32, i32, i32
  }
}

module attributes {stable_mosaic.version = 11 : i64} {
  func.func @_attblock_kernel(%arg0: i32, %arg1: memref<6x32x16xf32, #tpu.memory_space<vmem>>, %arg2: memref<16x32xf32, #tpu.memory_space<vmem>>, %arg3: memref<16x1xf32, #tpu.memory_space<vmem>>, %arg4: memref<6x8x1xf32, #tpu.memory_space<vmem>>, %arg5: memref<6x8x16xf32, #tpu.memory_space<vmem>>, %arg6: memref<6x8x16xf32, #tpu.memory_space<vmem>>) attributes {dimension_semantics = [#tpu.dimension_semantics<parallel>], iteration_bounds = array<i64: 2>, scalar_prefetch = 0 : i64, scratch_operands = 0 : i64, tpu.core_type = #tpu.core_type<tc>, window_params = [{transform_indices = @transform_0, window_bounds = array<i64: 6, 32, 16>}, {pipeline_mode = #tpu.pipeline_mode<synchronous>, transform_indices = @transform_1, window_bounds = array<i64: 16, 32>}, {pipeline_mode = #tpu.pipeline_mode<synchronous>, transform_indices = @transform_2, window_bounds = array<i64: 16, 1>}, {transform_indices = @transform_3, window_bounds = array<i64: 6, 8, 1>}, {transform_indices = @transform_4, window_bounds = array<i64: 6, 8, 16>}, {transform_indices = @transform_5, window_bounds = array<i64: 6, 8, 16>}]} {
    %c0 = arith.constant 0 : index
    %c0_0 = arith.constant 0 : index
    %0 = vector.load %arg2[%c0, %c0_0] : memref<16x32xf32, #tpu.memory_space<vmem>>, vector<16x32xf32>
    %c0_1 = arith.constant 0 : index
    %c0_2 = arith.constant 0 : index
    %1 = vector.load %arg3[%c0_1, %c0_2] : memref<16x1xf32, #tpu.memory_space<vmem>>, vector<16x1xf32>
    %2 = vector.shape_cast %1 : vector<16x1xf32> to vector<16x1xf32>
    %3 = vector.broadcast %2 : vector<16x1xf32> to vector<16x16xf32>
    %c0_3 = arith.constant 0 : index
    %c0_4 = arith.constant 0 : index
    %c0_5 = arith.constant 0 : index
    %4 = vector.load %arg1[%c0_3, %c0_4, %c0_5] : memref<6x32x16xf32, #tpu.memory_space<vmem>>, vector<1x32x16xf32>
    %5 = vector.shape_cast %4 : vector<1x32x16xf32> to vector<32x16xf32>
    %cst = arith.constant dense<0.000000e+00> : vector<16x16xf32>
    %6 = tpu.matmul %0, %5, %cst {dimension_numbers = #tpu.dot_dimension_numbers<[1], [0], [0], [1], [0, 0, 1, 1], [], []>} : vector<16x32xf32>, vector<32x16xf32>, vector<16x16xf32> -> vector<16x16xf32>
    %7 = arith.addf %6, %3 : vector<16x16xf32>
    %8 = vector.extract_strided_slice %7 {offsets = [0, 0], sizes = [8, 16], strides = [1, 1]} : vector<16x16xf32> to vector<8x16xf32>
    %9 = math.tanh %8 : vector<8x16xf32>
    %10 = vector.extract_strided_slice %7 {offsets = [8, 0], sizes = [8, 16], strides = [1, 1]} : vector<16x16xf32> to vector<8x16xf32>
    %11 = arith.negf %10 : vector<8x16xf32>
    %12 = math.exp %11 : vector<8x16xf32>
    %cst_6 = arith.constant 1.000000e+00 : f32
    %13 = vector.broadcast %cst_6 : f32 to vector<8x16xf32>
    %14 = arith.addf %13, %12 : vector<8x16xf32>
    %15 = arith.divf %13, %14 : vector<8x16xf32>
    %16 = math.exp %9 : vector<8x16xf32>
    %cst_7 = arith.constant dense<0.000000e+00> : vector<8xf32>
    %17 = vector.multi_reduction <add>, %16, %cst_7 [1] : vector<8x16xf32> to vector<8xf32>
    %18 = vector.shape_cast %17 : vector<8xf32> to vector<8x1xf32>
    %19 = tpu.reciprocal %18 {approx = true} : vector<8x1xf32> -> vector<8x1xf32>
    %20 = arith.mulf %18, %19 : vector<8x1xf32>
    %cst_8 = arith.constant 2.000000e+00 : f32
    %21 = vector.broadcast %cst_8 : f32 to vector<8x1xf32>
    %22 = arith.subf %21, %20 : vector<8x1xf32>
    %23 = arith.mulf %19, %22 : vector<8x1xf32>
    %24 = vector.broadcast %23 : vector<8x1xf32> to vector<8x16xf32>
    %25 = arith.mulf %16, %24 : vector<8x16xf32>
    %c0_9 = arith.constant 0 : index
    %c0_10 = arith.constant 0 : index
    %c0_11 = arith.constant 0 : index
    %26 = vector.load %arg5[%c0_9, %c0_10, %c0_11] : memref<6x8x16xf32, #tpu.memory_space<vmem>>, vector<1x8x16xf32>
    %27 = vector.shape_cast %26 : vector<1x8x16xf32> to vector<8x16xf32>
    %28 = vector.shape_cast %25 : vector<8x16xf32> to vector<1x8x16xf32>
    tpu.vector_store %arg5[%c0_9, %c0_10, %c0_11], %28 {strides = array<i32>} : memref<6x8x16xf32, #tpu.memory_space<vmem>>, vector<1x8x16xf32>,
    %c0_12 = arith.constant 0 : index
    %c0_13 = arith.constant 0 : index
    %c0_14 = arith.constant 0 : index
    %29 = vector.load %arg6[%c0_12, %c0_13, %c0_14] : memref<6x8x16xf32, #tpu.memory_space<vmem>>, vector<1x8x16xf32>
    %30 = vector.shape_cast %29 : vector<1x8x16xf32> to vector<8x16xf32>
    %31 = vector.shape_cast %15 : vector<8x16xf32> to vector<1x8x16xf32>
    tpu.vector_store %arg6[%c0_12, %c0_13, %c0_14], %31 {strides = array<i32>} : memref<6x8x16xf32, #tpu.memory_space<vmem>>, vector<1x8x16xf32>,
    %32 = arith.mulf %16, %15 : vector<8x16xf32>
    %cst_15 = arith.constant dense<0.000000e+00> : vector<8xf32>
    %33 = vector.multi_reduction <add>, %32, %cst_15 [1] : vector<8x16xf32> to vector<8xf32>
    %34 = vector.shape_cast %33 : vector<8xf32> to vector<8x1xf32>
    %35 = arith.mulf %34, %23 : vector<8x1xf32>
    %c0_16 = arith.constant 0 : index
    %c0_17 = arith.constant 0 : index
    %c0_18 = arith.constant 0 : index
    %36 = vector.load %arg4[%c0_16, %c0_17, %c0_18] : memref<6x8x1xf32, #tpu.memory_space<vmem>>, vector<1x8x1xf32>
    %37 = vector.shape_cast %36 : vector<1x8x1xf32> to vector<8x1xf32>
    %38 = vector.shape_cast %35 : vector<8x1xf32> to vector<1x8x1xf32>
    tpu.vector_store %arg4[%c0_16, %c0_17, %c0_18], %38 {strides = array<i32>} : memref<6x8x1xf32, #tpu.memory_space<vmem>>, vector<1x8x1xf32>,
    %c1 = arith.constant 1 : index
    %c0_19 = arith.constant 0 : index
    %c0_20 = arith.constant 0 : index
    %39 = vector.load %arg1[%c1, %c0_19, %c0_20] : memref<6x32x16xf32, #tpu.memory_space<vmem>>, vector<1x32x16xf32>
    %40 = vector.shape_cast %39 : vector<1x32x16xf32> to vector<32x16xf32>
    %cst_21 = arith.constant dense<0.000000e+00> : vector<16x16xf32>
    %41 = tpu.matmul %0, %40, %cst_21 {dimension_numbers = #tpu.dot_dimension_numbers<[1], [0], [0], [1], [0, 0, 1, 1], [], []>} : vector<16x32xf32>, vector<32x16xf32>, vector<16x16xf32> -> vector<16x16xf32>
    %42 = arith.addf %41, %3 : vector<16x16xf32>
    %43 = vector.extract_strided_slice %42 {offsets = [0, 0], sizes = [8, 16], strides = [1, 1]} : vector<16x16xf32> to vector<8x16xf32>
    %44 = math.tanh %43 : vector<8x16xf32>
    %45 = vector.extract_strided_slice %42 {offsets = [8, 0], sizes = [8, 16], strides = [1, 1]} : vector<16x16xf32> to vector<8x16xf32>
    %46 = arith.negf %45 : vector<8x16xf32>
    %47 = math.exp %46 : vector<8x16xf32>
    %cst_22 = arith.constant 1.000000e+00 : f32
    %48 = vector.broadcast %cst_22 : f32 to vector<8x16xf32>
    %49 = arith.addf %48, %47 : vector<8x16xf32>
    %50 = arith.divf %48, %49 : vector<8x16xf32>
    %51 = math.exp %44 : vector<8x16xf32>
    %cst_23 = arith.constant dense<0.000000e+00> : vector<8xf32>
    %52 = vector.multi_reduction <add>, %51, %cst_23 [1] : vector<8x16xf32> to vector<8xf32>
    %53 = vector.shape_cast %52 : vector<8xf32> to vector<8x1xf32>
    %54 = tpu.reciprocal %53 {approx = true} : vector<8x1xf32> -> vector<8x1xf32>
    %55 = arith.mulf %53, %54 : vector<8x1xf32>
    %cst_24 = arith.constant 2.000000e+00 : f32
    %56 = vector.broadcast %cst_24 : f32 to vector<8x1xf32>
    %57 = arith.subf %56, %55 : vector<8x1xf32>
    %58 = arith.mulf %54, %57 : vector<8x1xf32>
    %59 = vector.broadcast %58 : vector<8x1xf32> to vector<8x16xf32>
    %60 = arith.mulf %51, %59 : vector<8x16xf32>
    %c1_25 = arith.constant 1 : index
    %c0_26 = arith.constant 0 : index
    %c0_27 = arith.constant 0 : index
    %61 = vector.load %arg5[%c1_25, %c0_26, %c0_27] : memref<6x8x16xf32, #tpu.memory_space<vmem>>, vector<1x8x16xf32>
    %62 = vector.shape_cast %61 : vector<1x8x16xf32> to vector<8x16xf32>
    %63 = vector.shape_cast %60 : vector<8x16xf32> to vector<1x8x16xf32>
    tpu.vector_store %arg5[%c1_25, %c0_26, %c0_27], %63 {strides = array<i32>} : memref<6x8x16xf32, #tpu.memory_space<vmem>>, vector<1x8x16xf32>,
    %c1_28 = arith.constant 1 : index
    %c0_29 = arith.constant 0 : index
    %c0_30 = arith.constant 0 : index
    %64 = vector.load %arg6[%c1_28, %c0_29, %c0_30] : memref<6x8x16xf32, #tpu.memory_space<vmem>>, vector<1x8x16xf32>
    %65 = vector.shape_cast %64 : vector<1x8x16xf32> to vector<8x16xf32>
    %66 = vector.shape_cast %50 : vector<8x16xf32> to vector<1x8x16xf32>
    tpu.vector_store %arg6[%c1_28, %c0_29, %c0_30], %66 {strides = array<i32>} : memref<6x8x16xf32, #tpu.memory_space<vmem>>, vector<1x8x16xf32>,
    %67 = arith.mulf %51, %50 : vector<8x16xf32>
    %cst_31 = arith.constant dense<0.000000e+00> : vector<8xf32>
    %68 = vector.multi_reduction <add>, %67, %cst_31 [1] : vector<8x16xf32> to vector<8xf32>
    %69 = vector.shape_cast %68 : vector<8xf32> to vector<8x1xf32>
    %70 = arith.mulf %69, %58 : vector<8x1xf32>
    %c1_32 = arith.constant 1 : index
    %c0_33 = arith.constant 0 : index
    %c0_34 = arith.constant 0 : index
    %71 = vector.load %arg4[%c1_32, %c0_33, %c0_34] : memref<6x8x1xf32, #tpu.memory_space<vmem>>, vector<1x8x1xf32>
    %72 = vector.shape_cast %71 : vector<1x8x1xf32> to vector<8x1xf32>
    %73 = vector.shape_cast %70 : vector<8x1xf32> to vector<1x8x1xf32>
    tpu.vector_store %arg4[%c1_32, %c0_33, %c0_34], %73 {strides = array<i32>} : memref<6x8x1xf32, #tpu.memory_space<vmem>>, vector<1x8x1xf32>,
    %c2 = arith.constant 2 : index
    %c0_35 = arith.constant 0 : index
    %c0_36 = arith.constant 0 : index
    %74 = vector.load %arg1[%c2, %c0_35, %c0_36] : memref<6x32x16xf32, #tpu.memory_space<vmem>>, vector<1x32x16xf32>
    %75 = vector.shape_cast %74 : vector<1x32x16xf32> to vector<32x16xf32>
    %cst_37 = arith.constant dense<0.000000e+00> : vector<16x16xf32>
    %76 = tpu.matmul %0, %75, %cst_37 {dimension_numbers = #tpu.dot_dimension_numbers<[1], [0], [0], [1], [0, 0, 1, 1], [], []>} : vector<16x32xf32>, vector<32x16xf32>, vector<16x16xf32> -> vector<16x16xf32>
    %77 = arith.addf %76, %3 : vector<16x16xf32>
    %78 = vector.extract_strided_slice %77 {offsets = [0, 0], sizes = [8, 16], strides = [1, 1]} : vector<16x16xf32> to vector<8x16xf32>
    %79 = math.tanh %78 : vector<8x16xf32>
    %80 = vector.extract_strided_slice %77 {offsets = [8, 0], sizes = [8, 16], strides = [1, 1]} : vector<16x16xf32> to vector<8x16xf32>
    %81 = arith.negf %80 : vector<8x16xf32>
    %82 = math.exp %81 : vector<8x16xf32>
    %cst_38 = arith.constant 1.000000e+00 : f32
    %83 = vector.broadcast %cst_38 : f32 to vector<8x16xf32>
    %84 = arith.addf %83, %82 : vector<8x16xf32>
    %85 = arith.divf %83, %84 : vector<8x16xf32>
    %86 = math.exp %79 : vector<8x16xf32>
    %cst_39 = arith.constant dense<0.000000e+00> : vector<8xf32>
    %87 = vector.multi_reduction <add>, %86, %cst_39 [1] : vector<8x16xf32> to vector<8xf32>
    %88 = vector.shape_cast %87 : vector<8xf32> to vector<8x1xf32>
    %89 = tpu.reciprocal %88 {approx = true} : vector<8x1xf32> -> vector<8x1xf32>
    %90 = arith.mulf %88, %89 : vector<8x1xf32>
    %cst_40 = arith.constant 2.000000e+00 : f32
    %91 = vector.broadcast %cst_40 : f32 to vector<8x1xf32>
    %92 = arith.subf %91, %90 : vector<8x1xf32>
    %93 = arith.mulf %89, %92 : vector<8x1xf32>
    %94 = vector.broadcast %93 : vector<8x1xf32> to vector<8x16xf32>
    %95 = arith.mulf %86, %94 : vector<8x16xf32>
    %c2_41 = arith.constant 2 : index
    %c0_42 = arith.constant 0 : index
    %c0_43 = arith.constant 0 : index
    %96 = vector.load %arg5[%c2_41, %c0_42, %c0_43] : memref<6x8x16xf32, #tpu.memory_space<vmem>>, vector<1x8x16xf32>
    %97 = vector.shape_cast %96 : vector<1x8x16xf32> to vector<8x16xf32>
    %98 = vector.shape_cast %95 : vector<8x16xf32> to vector<1x8x16xf32>
    tpu.vector_store %arg5[%c2_41, %c0_42, %c0_43], %98 {strides = array<i32>} : memref<6x8x16xf32, #tpu.memory_space<vmem>>, vector<1x8x16xf32>,
    %c2_44 = arith.constant 2 : index
    %c0_45 = arith.constant 0 : index
    %c0_46 = arith.constant 0 : index
    %99 = vector.load %arg6[%c2_44, %c0_45, %c0_46] : memref<6x8x16xf32, #tpu.memory_space<vmem>>, vector<1x8x16xf32>
    %100 = vector.shape_cast %99 : vector<1x8x16xf32> to vector<8x16xf32>
    %101 = vector.shape_cast %85 : vector<8x16xf32> to vector<1x8x16xf32>
    tpu.vector_store %arg6[%c2_44, %c0_45, %c0_46], %101 {strides = array<i32>} : memref<6x8x16xf32, #tpu.memory_space<vmem>>, vector<1x8x16xf32>,
    %102 = arith.mulf %86, %85 : vector<8x16xf32>
    %cst_47 = arith.constant dense<0.000000e+00> : vector<8xf32>
    %103 = vector.multi_reduction <add>, %102, %cst_47 [1] : vector<8x16xf32> to vector<8xf32>
    %104 = vector.shape_cast %103 : vector<8xf32> to vector<8x1xf32>
    %105 = arith.mulf %104, %93 : vector<8x1xf32>
    %c2_48 = arith.constant 2 : index
    %c0_49 = arith.constant 0 : index
    %c0_50 = arith.constant 0 : index
    %106 = vector.load %arg4[%c2_48, %c0_49, %c0_50] : memref<6x8x1xf32, #tpu.memory_space<vmem>>, vector<1x8x1xf32>
    %107 = vector.shape_cast %106 : vector<1x8x1xf32> to vector<8x1xf32>
    %108 = vector.shape_cast %105 : vector<8x1xf32> to vector<1x8x1xf32>
    tpu.vector_store %arg4[%c2_48, %c0_49, %c0_50], %108 {strides = array<i32>} : memref<6x8x1xf32, #tpu.memory_space<vmem>>, vector<1x8x1xf32>,
    %c3 = arith.constant 3 : index
    %c0_51 = arith.constant 0 : index
    %c0_52 = arith.constant 0 : index
    %109 = vector.load %arg1[%c3, %c0_51, %c0_52] : memref<6x32x16xf32, #tpu.memory_space<vmem>>, vector<1x32x16xf32>
    %110 = vector.shape_cast %109 : vector<1x32x16xf32> to vector<32x16xf32>
    %cst_53 = arith.constant dense<0.000000e+00> : vector<16x16xf32>
    %111 = tpu.matmul %0, %110, %cst_53 {dimension_numbers = #tpu.dot_dimension_numbers<[1], [0], [0], [1], [0, 0, 1, 1], [], []>} : vector<16x32xf32>, vector<32x16xf32>, vector<16x16xf32> -> vector<16x16xf32>
    %112 = arith.addf %111, %3 : vector<16x16xf32>
    %113 = vector.extract_strided_slice %112 {offsets = [0, 0], sizes = [8, 16], strides = [1, 1]} : vector<16x16xf32> to vector<8x16xf32>
    %114 = math.tanh %113 : vector<8x16xf32>
    %115 = vector.extract_strided_slice %112 {offsets = [8, 0], sizes = [8, 16], strides = [1, 1]} : vector<16x16xf32> to vector<8x16xf32>
    %116 = arith.negf %115 : vector<8x16xf32>
    %117 = math.exp %116 : vector<8x16xf32>
    %cst_54 = arith.constant 1.000000e+00 : f32
    %118 = vector.broadcast %cst_54 : f32 to vector<8x16xf32>
    %119 = arith.addf %118, %117 : vector<8x16xf32>
    %120 = arith.divf %118, %119 : vector<8x16xf32>
    %121 = math.exp %114 : vector<8x16xf32>
    %cst_55 = arith.constant dense<0.000000e+00> : vector<8xf32>
    %122 = vector.multi_reduction <add>, %121, %cst_55 [1] : vector<8x16xf32> to vector<8xf32>
    %123 = vector.shape_cast %122 : vector<8xf32> to vector<8x1xf32>
    %124 = tpu.reciprocal %123 {approx = true} : vector<8x1xf32> -> vector<8x1xf32>
    %125 = arith.mulf %123, %124 : vector<8x1xf32>
    %cst_56 = arith.constant 2.000000e+00 : f32
    %126 = vector.broadcast %cst_56 : f32 to vector<8x1xf32>
    %127 = arith.subf %126, %125 : vector<8x1xf32>
    %128 = arith.mulf %124, %127 : vector<8x1xf32>
    %129 = vector.broadcast %128 : vector<8x1xf32> to vector<8x16xf32>
    %130 = arith.mulf %121, %129 : vector<8x16xf32>
    %c3_57 = arith.constant 3 : index
    %c0_58 = arith.constant 0 : index
    %c0_59 = arith.constant 0 : index
    %131 = vector.load %arg5[%c3_57, %c0_58, %c0_59] : memref<6x8x16xf32, #tpu.memory_space<vmem>>, vector<1x8x16xf32>
    %132 = vector.shape_cast %131 : vector<1x8x16xf32> to vector<8x16xf32>
    %133 = vector.shape_cast %130 : vector<8x16xf32> to vector<1x8x16xf32>
    tpu.vector_store %arg5[%c3_57, %c0_58, %c0_59], %133 {strides = array<i32>} : memref<6x8x16xf32, #tpu.memory_space<vmem>>, vector<1x8x16xf32>,
    %c3_60 = arith.constant 3 : index
    %c0_61 = arith.constant 0 : index
    %c0_62 = arith.constant 0 : index
    %134 = vector.load %arg6[%c3_60, %c0_61, %c0_62] : memref<6x8x16xf32, #tpu.memory_space<vmem>>, vector<1x8x16xf32>
    %135 = vector.shape_cast %134 : vector<1x8x16xf32> to vector<8x16xf32>
    %136 = vector.shape_cast %120 : vector<8x16xf32> to vector<1x8x16xf32>
    tpu.vector_store %arg6[%c3_60, %c0_61, %c0_62], %136 {strides = array<i32>} : memref<6x8x16xf32, #tpu.memory_space<vmem>>, vector<1x8x16xf32>,
    %137 = arith.mulf %121, %120 : vector<8x16xf32>
    %cst_63 = arith.constant dense<0.000000e+00> : vector<8xf32>
    %138 = vector.multi_reduction <add>, %137, %cst_63 [1] : vector<8x16xf32> to vector<8xf32>
    %139 = vector.shape_cast %138 : vector<8xf32> to vector<8x1xf32>
    %140 = arith.mulf %139, %128 : vector<8x1xf32>
    %c3_64 = arith.constant 3 : index
    %c0_65 = arith.constant 0 : index
    %c0_66 = arith.constant 0 : index
    %141 = vector.load %arg4[%c3_64, %c0_65, %c0_66] : memref<6x8x1xf32, #tpu.memory_space<vmem>>, vector<1x8x1xf32>
    %142 = vector.shape_cast %141 : vector<1x8x1xf32> to vector<8x1xf32>
    %143 = vector.shape_cast %140 : vector<8x1xf32> to vector<1x8x1xf32>
    tpu.vector_store %arg4[%c3_64, %c0_65, %c0_66], %143 {strides = array<i32>} : memref<6x8x1xf32, #tpu.memory_space<vmem>>, vector<1x8x1xf32>,
    %c4 = arith.constant 4 : index
    %c0_67 = arith.constant 0 : index
    %c0_68 = arith.constant 0 : index
    %144 = vector.load %arg1[%c4, %c0_67, %c0_68] : memref<6x32x16xf32, #tpu.memory_space<vmem>>, vector<1x32x16xf32>
    %145 = vector.shape_cast %144 : vector<1x32x16xf32> to vector<32x16xf32>
    %cst_69 = arith.constant dense<0.000000e+00> : vector<16x16xf32>
    %146 = tpu.matmul %0, %145, %cst_69 {dimension_numbers = #tpu.dot_dimension_numbers<[1], [0], [0], [1], [0, 0, 1, 1], [], []>} : vector<16x32xf32>, vector<32x16xf32>, vector<16x16xf32> -> vector<16x16xf32>
    %147 = arith.addf %146, %3 : vector<16x16xf32>
    %148 = vector.extract_strided_slice %147 {offsets = [0, 0], sizes = [8, 16], strides = [1, 1]} : vector<16x16xf32> to vector<8x16xf32>
    %149 = math.tanh %148 : vector<8x16xf32>
    %150 = vector.extract_strided_slice %147 {offsets = [8, 0], sizes = [8, 16], strides = [1, 1]} : vector<16x16xf32> to vector<8x16xf32>
    %151 = arith.negf %150 : vector<8x16xf32>
    %152 = math.exp %151 : vector<8x16xf32>
    %cst_70 = arith.constant 1.000000e+00 : f32
    %153 = vector.broadcast %cst_70 : f32 to vector<8x16xf32>
    %154 = arith.addf %153, %152 : vector<8x16xf32>
    %155 = arith.divf %153, %154 : vector<8x16xf32>
    %156 = math.exp %149 : vector<8x16xf32>
    %cst_71 = arith.constant dense<0.000000e+00> : vector<8xf32>
    %157 = vector.multi_reduction <add>, %156, %cst_71 [1] : vector<8x16xf32> to vector<8xf32>
    %158 = vector.shape_cast %157 : vector<8xf32> to vector<8x1xf32>
    %159 = tpu.reciprocal %158 {approx = true} : vector<8x1xf32> -> vector<8x1xf32>
    %160 = arith.mulf %158, %159 : vector<8x1xf32>
    %cst_72 = arith.constant 2.000000e+00 : f32
    %161 = vector.broadcast %cst_72 : f32 to vector<8x1xf32>
    %162 = arith.subf %161, %160 : vector<8x1xf32>
    %163 = arith.mulf %159, %162 : vector<8x1xf32>
    %164 = vector.broadcast %163 : vector<8x1xf32> to vector<8x16xf32>
    %165 = arith.mulf %156, %164 : vector<8x16xf32>
    %c4_73 = arith.constant 4 : index
    %c0_74 = arith.constant 0 : index
    %c0_75 = arith.constant 0 : index
    %166 = vector.load %arg5[%c4_73, %c0_74, %c0_75] : memref<6x8x16xf32, #tpu.memory_space<vmem>>, vector<1x8x16xf32>
    %167 = vector.shape_cast %166 : vector<1x8x16xf32> to vector<8x16xf32>
    %168 = vector.shape_cast %165 : vector<8x16xf32> to vector<1x8x16xf32>
    tpu.vector_store %arg5[%c4_73, %c0_74, %c0_75], %168 {strides = array<i32>} : memref<6x8x16xf32, #tpu.memory_space<vmem>>, vector<1x8x16xf32>,
    %c4_76 = arith.constant 4 : index
    %c0_77 = arith.constant 0 : index
    %c0_78 = arith.constant 0 : index
    %169 = vector.load %arg6[%c4_76, %c0_77, %c0_78] : memref<6x8x16xf32, #tpu.memory_space<vmem>>, vector<1x8x16xf32>
    %170 = vector.shape_cast %169 : vector<1x8x16xf32> to vector<8x16xf32>
    %171 = vector.shape_cast %155 : vector<8x16xf32> to vector<1x8x16xf32>
    tpu.vector_store %arg6[%c4_76, %c0_77, %c0_78], %171 {strides = array<i32>} : memref<6x8x16xf32, #tpu.memory_space<vmem>>, vector<1x8x16xf32>,
    %172 = arith.mulf %156, %155 : vector<8x16xf32>
    %cst_79 = arith.constant dense<0.000000e+00> : vector<8xf32>
    %173 = vector.multi_reduction <add>, %172, %cst_79 [1] : vector<8x16xf32> to vector<8xf32>
    %174 = vector.shape_cast %173 : vector<8xf32> to vector<8x1xf32>
    %175 = arith.mulf %174, %163 : vector<8x1xf32>
    %c4_80 = arith.constant 4 : index
    %c0_81 = arith.constant 0 : index
    %c0_82 = arith.constant 0 : index
    %176 = vector.load %arg4[%c4_80, %c0_81, %c0_82] : memref<6x8x1xf32, #tpu.memory_space<vmem>>, vector<1x8x1xf32>
    %177 = vector.shape_cast %176 : vector<1x8x1xf32> to vector<8x1xf32>
    %178 = vector.shape_cast %175 : vector<8x1xf32> to vector<1x8x1xf32>
    tpu.vector_store %arg4[%c4_80, %c0_81, %c0_82], %178 {strides = array<i32>} : memref<6x8x1xf32, #tpu.memory_space<vmem>>, vector<1x8x1xf32>,
    %c5 = arith.constant 5 : index
    %c0_83 = arith.constant 0 : index
    %c0_84 = arith.constant 0 : index
    %179 = vector.load %arg1[%c5, %c0_83, %c0_84] : memref<6x32x16xf32, #tpu.memory_space<vmem>>, vector<1x32x16xf32>
    %180 = vector.shape_cast %179 : vector<1x32x16xf32> to vector<32x16xf32>
    %cst_85 = arith.constant dense<0.000000e+00> : vector<16x16xf32>
    %181 = tpu.matmul %0, %180, %cst_85 {dimension_numbers = #tpu.dot_dimension_numbers<[1], [0], [0], [1], [0, 0, 1, 1], [], []>} : vector<16x32xf32>, vector<32x16xf32>, vector<16x16xf32> -> vector<16x16xf32>
    %182 = arith.addf %181, %3 : vector<16x16xf32>
    %183 = vector.extract_strided_slice %182 {offsets = [0, 0], sizes = [8, 16], strides = [1, 1]} : vector<16x16xf32> to vector<8x16xf32>
    %184 = math.tanh %183 : vector<8x16xf32>
    %185 = vector.extract_strided_slice %182 {offsets = [8, 0], sizes = [8, 16], strides = [1, 1]} : vector<16x16xf32> to vector<8x16xf32>
    %186 = arith.negf %185 : vector<8x16xf32>
    %187 = math.exp %186 : vector<8x16xf32>
    %cst_86 = arith.constant 1.000000e+00 : f32
    %188 = vector.broadcast %cst_86 : f32 to vector<8x16xf32>
    %189 = arith.addf %188, %187 : vector<8x16xf32>
    %190 = arith.divf %188, %189 : vector<8x16xf32>
    %191 = math.exp %184 : vector<8x16xf32>
    %cst_87 = arith.constant dense<0.000000e+00> : vector<8xf32>
    %192 = vector.multi_reduction <add>, %191, %cst_87 [1] : vector<8x16xf32> to vector<8xf32>
    %193 = vector.shape_cast %192 : vector<8xf32> to vector<8x1xf32>
    %194 = tpu.reciprocal %193 {approx = true} : vector<8x1xf32> -> vector<8x1xf32>
    %195 = arith.mulf %193, %194 : vector<8x1xf32>
    %cst_88 = arith.constant 2.000000e+00 : f32
    %196 = vector.broadcast %cst_88 : f32 to vector<8x1xf32>
    %197 = arith.subf %196, %195 : vector<8x1xf32>
    %198 = arith.mulf %194, %197 : vector<8x1xf32>
    %199 = vector.broadcast %198 : vector<8x1xf32> to vector<8x16xf32>
    %200 = arith.mulf %191, %199 : vector<8x16xf32>
    %c5_89 = arith.constant 5 : index
    %c0_90 = arith.constant 0 : index
    %c0_91 = arith.constant 0 : index
    %201 = vector.load %arg5[%c5_89, %c0_90, %c0_91] : memref<6x8x16xf32, #tpu.memory_space<vmem>>, vector<1x8x16xf32>
    %202 = vector.shape_cast %201 : vector<1x8x16xf32> to vector<8x16xf32>
    %203 = vector.shape_cast %200 : vector<8x16xf32> to vector<1x8x16xf32>
    tpu.vector_store %arg5[%c5_89, %c0_90, %c0_91], %203 {strides = array<i32>} : memref<6x8x16xf32, #tpu.memory_space<vmem>>, vector<1x8x16xf32>,
    %c5_92 = arith.constant 5 : index
    %c0_93 = arith.constant 0 : index
    %c0_94 = arith.constant 0 : index
    %204 = vector.load %arg6[%c5_92, %c0_93, %c0_94] : memref<6x8x16xf32, #tpu.memory_space<vmem>>, vector<1x8x16xf32>
    %205 = vector.shape_cast %204 : vector<1x8x16xf32> to vector<8x16xf32>
    %206 = vector.shape_cast %190 : vector<8x16xf32> to vector<1x8x16xf32>
    tpu.vector_store %arg6[%c5_92, %c0_93, %c0_94], %206 {strides = array<i32>} : memref<6x8x16xf32, #tpu.memory_space<vmem>>, vector<1x8x16xf32>,
    %207 = arith.mulf %191, %190 : vector<8x16xf32>
    %cst_95 = arith.constant dense<0.000000e+00> : vector<8xf32>
    %208 = vector.multi_reduction <add>, %207, %cst_95 [1] : vector<8x16xf32> to vector<8xf32>
    %209 = vector.shape_cast %208 : vector<8xf32> to vector<8x1xf32>
    %210 = arith.mulf %209, %198 : vector<8x1xf32>
    %c5_96 = arith.constant 5 : index
    %c0_97 = arith.constant 0 : index
    %c0_98 = arith.constant 0 : index
    %211 = vector.load %arg4[%c5_96, %c0_97, %c0_98] : memref<6x8x1xf32, #tpu.memory_space<vmem>>, vector<1x8x1xf32>
    %212 = vector.shape_cast %211 : vector<1x8x1xf32> to vector<8x1xf32>
    %213 = vector.shape_cast %210 : vector<8x1xf32> to vector<1x8x1xf32>
    tpu.vector_store %arg4[%c5_96, %c0_97, %c0_98], %213 {strides = array<i32>} : memref<6x8x1xf32, #tpu.memory_space<vmem>>, vector<1x8x1xf32>,
    return
  }
  func.func @transform_0(%arg0: i32) -> (i32, i32, i32) {
    %c0_i32 = arith.constant 0 : i32
    %c0_i32_0 = arith.constant 0 : i32
    %c0_i32_1 = arith.constant 0 : i32
    return %arg0, %c0_i32, %c0_i32_0 : i32, i32, i32
  }
  func.func @transform_1(%arg0: i32) -> (i32, i32) {
    %c0_i32 = arith.constant 0 : i32
    %c0_i32_0 = arith.constant 0 : i32
    %c0_i32_1 = arith.constant 0 : i32
    return %c0_i32, %c0_i32_0 : i32, i32
  }
  func.func @transform_2(%arg0: i32) -> (i32, i32) {
    %c0_i32 = arith.constant 0 : i32
    %c0_i32_0 = arith.constant 0 : i32
    %c0_i32_1 = arith.constant 0 : i32
    return %c0_i32, %c0_i32_0 : i32, i32
  }
  func.func @transform_3(%arg0: i32) -> (i32, i32, i32) {
    %c0_i32 = arith.constant 0 : i32
    %c0_i32_0 = arith.constant 0 : i32
    %c0_i32_1 = arith.constant 0 : i32
    return %arg0, %c0_i32, %c0_i32_0 : i32, i32, i32
  }
  func.func @transform_4(%arg0: i32) -> (i32, i32, i32) {
    %c0_i32 = arith.constant 0 : i32
    %c0_i32_0 = arith.constant 0 : i32
    %c0_i32_1 = arith.constant 0 : i32
    return %arg0, %c0_i32, %c0_i32_0 : i32, i32, i32
  }
  func.func @transform_5(%arg0: i32) -> (i32, i32, i32) {
    %c0_i32 = arith.constant 0 : i32
    %c0_i32_0 = arith.constant 0 : i32
    %c0_i32_1 = arith.constant 0 : i32
    return %arg0, %c0_i32, %c0_i32_0 : i32, i32, i32
  }
}

</mosaic_0001>

<llo_original>
// kernel: tpu_custom_call.1
$region0: #{tpu_custom_call.1}
  #allocation0 [shape = 'u32[]', space=smem, size = 0x4, offset = 0x4, fixed_abs, tag = 'smem constant byte address 0x4 - core index']
  #allocation1 [shape = 'u32[144,128]{1,0:T(1,128)}', space=vmem, size = 0x12000, scoped, tag = 'internal scratch']
  %s0 = inlined_call_operand.vmem [shape: f32[12,32,16], index: 0, kind: input, shape index: {}]
  %s1 = inlined_call_operand.vmem [shape: f32[16,32], index: 1, kind: input, shape index: {}]
  %s2 = inlined_call_operand.vmem [shape: f32[16,1], index: 2, kind: input, shape index: {}]
  %s3 = inlined_call_operand.vmem [shape: f32[12,8,1], index: 3, kind: output, shape index: {0}]
  %s4 = inlined_call_operand.hbm [shape: f32[12,8,16], index: 4, kind: output, shape index: {1}]
  %s5 = inlined_call_operand.hbm [shape: f32[12,8,16], index: 5, kind: output, shape index: {2}]
  %6 = xla_tuple %s3, %s4, %s5
  %s7 = sld [smem:[#allocation0]]
  $region61: #{tpu_custom_call.1} parent=0
    _
  %s9 = ssub.s32 1, %s7
  %s10 = scalar_select 0, %s9, %s7
  $region1: #{tpu_custom_call.1} parent=0
    #allocation2 [shape = 'u8[49152]{0}', space=vmem, size = 0xc000, scoped, tag = 'output window, operand 1']
    #allocation3 [shape = 's32[2]{0}', space=sflag, size = 0x8, scoped, tag = 'scoped memory for tpu_custom_call.1']
    #allocation4 [shape = 'u8[49152]{0}', space=vmem, size = 0xc000, scoped, tag = 'output window, operand 2']
    #allocation5 [shape = 's32[2]{0}', space=sflag, size = 0x8, scoped, tag = 'scoped memory for tpu_custom_call.1']
    %11 = vsyncpa [#allocation3], 0
    %s12 = scalar_lea.sflag [#allocation3], 1
    %13 = vsyncpa %s12, 0
    %14 = vsyncpa [#allocation5], 0
    %s15 = scalar_lea.sflag [#allocation5], 1
    %16 = vsyncpa %s15, 0
    loop: start=0, step=1, limit=4
    $region2: #{tpu_custom_call.1} parent=1 // loop_pre_header
      _
    $region3: #{tpu_custom_call.1} parent=1 // loop_header
      %s18 = sphi 0, %s22
      %p19 = scmp.ge.s32.totalorder %s18, 4
      %s28 = sphi 0, %s30
      %s31 = sphi 0, %s28
      %s32 = sphi 0, %s31
      %s48 = sphi 0, %s32
      %s52 = sphi 0, %s52
      %s54 = sphi 0, %s52
      %s55 = sphi 0, %s54
      %s69 = sphi 0, %s55
      %s73 = sphi 0, %s73
      %s75 = sphi 0, %s73
      %s76 = sphi 0, %s75
      %s90 = sphi 0, %s76
      %s96 = sphi 0, %s98
      %s99 = sphi 0, %s96
      %s100 = sphi 0, %s99
      %s116 = sphi 0, %s100
      %s122 = sphi 0, %s124
      %s125 = sphi 0, %s122
      %s126 = sphi 0, %s125
      %s142 = sphi 0, %s126
      %s148 = sphi 0, %s150
      %s151 = sphi 0, %s148
      %s152 = sphi 0, %s151
      %s168 = sphi 0, %s152
    $region4: #{tpu_custom_call.1} parent=1 // loop_header_branch
      %21 = sbr.rel (%p19) target = $region8
    $region5: #{tpu_custom_call.1} parent=1 // loop_body
      %s23 = ssub.s32 %s18, 1
      %s24 = ssub.s32 %s18, 2
      %s25 = sadd.s32 %s18, 1
      %s26 = ssub.s32 %s18, %s25
      %p27 = scmp.eq.s32.totalorder %s26, 0
      %s29 = sadd.s32 %s28, 1
      %s30 = scalar_select %p27, %s28, %s29
      %p33 = pneg %p27
      %p34 = scmp.eq.s32.totalorder %s18, 1
      %p35 = por %p33, %p34
      %p36 = scmp.ne.s32.totalorder %s28, %s31
      %p37 = scmp.eq.s32.totalorder %s18, 0
      %p38 = por %p36, %p37
      %p39 = scmp.ne.s32.totalorder %s28, %s31
      %p40 = scmp.eq.s32.totalorder %s23, 1
      %p41 = por %p39, %p40
      %p42 = scmp.ne.s32.totalorder %s31, %s32
      %p43 = scmp.eq.s32.totalorder %s23, 0
      %p44 = por %p42, %p43
      %p45 = scmp.ne.s32.totalorder %s31, %s32
      %p46 = scmp.eq.s32.totalorder %s24, 1
      %p47 = por %p45, %p46
      %p49 = scmp.ne.s32.totalorder %s32, %s48
      %p50 = scmp.eq.s32.totalorder %s24, 0
      %p51 = por %p49, %p50
      %s53 = sadd.s32 %s52, 1
      %p56 = scmp.eq.s32.totalorder %s18, 1
      %p57 = scmp.ne.s32.totalorder %s52, %s54
      %p58 = scmp.eq.s32.totalorder %s18, 0
      %p59 = por %p57, %p58
      %p60 = scmp.ne.s32.totalorder %s52, %s54
      %p61 = scmp.eq.s32.totalorder %s23, 1
      %p62 = por %p60, %p61
      %p63 = scmp.ne.s32.totalorder %s54, %s55
      %p64 = scmp.eq.s32.totalorder %s23, 0
      %p65 = por %p63, %p64
      %p66 = scmp.ne.s32.totalorder %s54, %s55
      %p67 = scmp.eq.s32.totalorder %s24, 1
      %p68 = por %p66, %p67
      %p70 = scmp.ne.s32.totalorder %s55, %s69
      %p71 = scmp.eq.s32.totalorder %s24, 0
      %p72 = por %p70, %p71
      %s74 = sadd.s32 %s73, 1
      %p77 = scmp.eq.s32.totalorder %s18, 1
      %p78 = scmp.ne.s32.totalorder %s73, %s75
      %p79 = scmp.eq.s32.totalorder %s18, 0
      %p80 = por %p78, %p79
      %p81 = scmp.ne.s32.totalorder %s73, %s75
      %p82 = scmp.eq.s32.totalorder %s23, 1
      %p83 = por %p81, %p82
      %p84 = scmp.ne.s32.totalorder %s75, %s76
      %p85 = scmp.eq.s32.totalorder %s23, 0
      %p86 = por %p84, %p85
      %p87 = scmp.ne.s32.totalorder %s75, %s76
      %p88 = scmp.eq.s32.totalorder %s24, 1
      %p89 = por %p87, %p88
      %p91 = scmp.ne.s32.totalorder %s76, %s90
      %p92 = scmp.eq.s32.totalorder %s24, 0
      %p93 = por %p91, %p92
      %s94 = ssub.s32 %s18, %s25
      %p95 = scmp.eq.s32.totalorder %s94, 0
      %s97 = sadd.s32 %s96, 1
      %s98 = scalar_select %p95, %s96, %s97
      %p101 = pneg %p95
      %p102 = scmp.eq.s32.totalorder %s18, 1
      %p103 = por %p101, %p102
      %p104 = scmp.ne.s32.totalorder %s96, %s99
      %p105 = scmp.eq.s32.totalorder %s18, 0
      %p106 = por %p104, %p105
      %p107 = scmp.ne.s32.totalorder %s96, %s99
      %p108 = scmp.eq.s32.totalorder %s23, 1
      %p109 = por %p107, %p108
      %p110 = scmp.ne.s32.totalorder %s99, %s100
      %p111 = scmp.eq.s32.totalorder %s23, 0
      %p112 = por %p110, %p111
      %p113 = scmp.ne.s32.totalorder %s99, %s100
      %p114 = scmp.eq.s32.totalorder %s24, 1
      %p115 = por %p113, %p114
      %p117 = scmp.ne.s32.totalorder %s100, %s116
      %p118 = scmp.eq.s32.totalorder %s24, 0
      %p119 = por %p117, %p118
      %s120 = ssub.s32 %s18, %s25
      %p121 = scmp.eq.s32.totalorder %s120, 0
      %s123 = sadd.s32 %s122, 1
      %s124 = scalar_select %p121, %s122, %s123
      %p127 = pneg %p121
      %p128 = scmp.eq.s32.totalorder %s18, 1
      %p129 = por %p127, %p128
      %p130 = scmp.ne.s32.totalorder %s122, %s125
      %p131 = scmp.eq.s32.totalorder %s18, 0
      %p132 = por %p130, %p131
      %p133 = scmp.ne.s32.totalorder %s122, %s125
      %p134 = scmp.eq.s32.totalorder %s23, 1
      %p135 = por %p133, %p134
      %p136 = scmp.ne.s32.totalorder %s125, %s126
      %p137 = scmp.eq.s32.totalorder %s23, 0
      %p138 = por %p136, %p137
      %p139 = scmp.ne.s32.totalorder %s125, %s126
      %p140 = scmp.eq.s32.totalorder %s24, 1
      %p141 = por %p139, %p140
      %p143 = scmp.ne.s32.totalorder %s126, %s142
      %p144 = scmp.eq.s32.totalorder %s24, 0
      %p145 = por %p143, %p144
      %s146 = ssub.s32 %s18, %s25
      %p147 = scmp.eq.s32.totalorder %s146, 0
      %s149 = sadd.s32 %s148, 1
      %s150 = scalar_select %p147, %s148, %s149
      %p153 = pneg %p147
      %p154 = scmp.eq.s32.totalorder %s18, 1
      %p155 = por %p153, %p154
      %p156 = scmp.ne.s32.totalorder %s148, %s151
      %p157 = scmp.eq.s32.totalorder %s18, 0
      %p158 = por %p156, %p157
      %p159 = scmp.ne.s32.totalorder %s148, %s151
      %p160 = scmp.eq.s32.totalorder %s23, 1
      %p161 = por %p159, %p160
      %p162 = scmp.ne.s32.totalorder %s151, %s152
      %p163 = scmp.eq.s32.totalorder %s23, 0
      %p164 = por %p162, %p163
      %p165 = scmp.ne.s32.totalorder %s151, %s152
      %p166 = scmp.eq.s32.totalorder %s24, 1
      %p167 = por %p165, %p166
      %p169 = scmp.ne.s32.totalorder %s152, %s168
      %p170 = scmp.eq.s32.totalorder %s24, 0
      %p171 = por %p169, %p170
      %p172 = scmp.le.s32.totalorder 1, %s18
      %p173 = scmp.lt.s32.totalorder %s18, 3
      %p174 = pnand %p172, %p173
      %p175 = pneg %p174
      // Predicated region
      $region9: #{tpu_custom_call.1} parent=5 // pred_check
        _
      $region10: #{tpu_custom_call.1} parent=5 // pred_check_branch
        %177 = sbr.rel (%p174) target = $region12
      $region11: #{tpu_custom_call.1} parent=5 // pred_region
        %s178 = ssub.s32 %s18, 1
        // Predicated region
        $region13: #{tpu_custom_call.1} parent=11 // pred_check
          %p179 = pneg %p65
        $region14: #{tpu_custom_call.1} parent=11 // pred_check_branch
          %181 = sbr.rel (%p179) target = $region16
        $region15: #{tpu_custom_call.1} parent=11 // pred_region
          _
        $region16: #{tpu_custom_call.1} parent=11 // pred_fallthru
          _
        // Predicated region
        $region17: #{tpu_custom_call.1} parent=11 // pred_check
          %p182 = pneg %p86
        $region18: #{tpu_custom_call.1} parent=11 // pred_check_branch
          %184 = sbr.rel (%p182) target = $region20
        $region19: #{tpu_custom_call.1} parent=11 // pred_region
          _
        $region20: #{tpu_custom_call.1} parent=11 // pred_fallthru
          _
      $region12: #{tpu_custom_call.1} parent=5 // pred_fallthru
        _
      %p185 = scmp.lt.s32.totalorder %s18, 2
      // Predicated region
      $region21: #{tpu_custom_call.1} parent=5 // pred_check
        %p186 = pneg %p185
      $region22: #{tpu_custom_call.1} parent=5 // pred_check_branch
        %188 = sbr.rel (%p186) target = $region24
      $region23: #{tpu_custom_call.1} parent=5 // pred_region
        // Predicated region
        $region25: #{tpu_custom_call.1} parent=23 // pred_check
          %p189 = pneg %p38
        $region26: #{tpu_custom_call.1} parent=23 // pred_check_branch
          %191 = sbr.rel (%p189) target = $region28
        $region27: #{tpu_custom_call.1} parent=23 // pred_region
          %s192 = smul.u32 6, %s18
          %p193 = scmp.lt.s32.totalorder %s192, 11
          %s194 = scalar_select %p193, %s192, 11
          %s195 = smul.addr %s194, 4
          %s196 = smul.addr %s195, 8
          %s197 = scalar_lea.vmem %s0, %s196
          %s198 = smul.u32 6, %s18
        $region28: #{tpu_custom_call.1} parent=23 // pred_fallthru
          _
      $region24: #{tpu_custom_call.1} parent=5 // pred_fallthru
        _
      %p199 = scmp.le.s32.totalorder 1, %s18
      %p200 = scmp.lt.s32.totalorder %s18, 3
      %p201 = pnand %p199, %p200
      %p202 = pneg %p201
      // Predicated region
      $region29: #{tpu_custom_call.1} parent=5 // pred_check
        _
      $region30: #{tpu_custom_call.1} parent=5 // pred_check_branch
        %204 = sbr.rel (%p201) target = $region32
      $region31: #{tpu_custom_call.1} parent=5 // pred_region
        %s205 = ssub.s32 %s18, 1
        %s206 = smul.u32 6, %s23
        %p207 = scmp.lt.s32.totalorder %s206, 11
        %s208 = scalar_select %p207, %s206, 11
        %s209 = smul.addr %s208, 4
        %s210 = smul.addr %s209, 8
        %s211 = scalar_lea.vmem %s0, %s210
        %p212 = pneg %p44
        %p213 = pneg %p41
        %p214 = pneg %p65
        %p215 = pneg %p62
        %p216 = pneg %p86
        %p217 = pneg %p83
        %p218 = pneg %p112
        %p219 = pneg %p109
        %s220 = smul.u32 6, %s23
        %p221 = scmp.lt.s32.totalorder %s220, 11
        %s222 = scalar_select %p221, %s220, 11
        %s223 = smul.addr %s222, 8
        %s224 = scalar_lea.vmem %s3, %s223
        %p225 = pneg %p138
        %p226 = pneg %p135
        %s227 = sand.u32 %s125, 1
        %s228 = scalar_lea.sflag [#allocation3], %s227
        %s229 = sand.u32 %s125, 1
        %s230 = smul.addr %s229, 48
        %s231 = scalar_lea.vmem [#allocation2], %s230
        %p232 = pneg %p164
        %p233 = pneg %p161
        %s234 = sand.u32 %s151, 1
        %s235 = scalar_lea.sflag [#allocation5], %s234
        %s236 = sand.u32 %s151, 1
        %s237 = smul.addr %s236, 48
        %s238 = scalar_lea.vmem [#allocation4], %s237
        %s239 = smul.u32 6, %s23
        %p240 = scmp.lt.s32.totalorder %s239, 11
        %s241 = scalar_select %p240, %s239, 11
        %s242 = smul.addr %s241, 4
        %s243 = smul.addr %s242, 8
        %s244 = scalar_lea.vmem %s0, %s243
        %s245 = smul.u32 6, %s23
        %s246 = smul.u32 6, %s23
        %p247 = scmp.lt.s32.totalorder %s246, 11
        %s248 = scalar_select %p247, %s246, 11
        %s249 = smul.addr %s248, 8
        %s250 = scalar_lea.vmem %s3, %s249
        %s251 = smul.u32 6, %s23
        %s252 = smul.u32 6, %s23
        %s253 = smul.u32 6, %s23
        %v254 = vld [vmem:[%s1] sm:$0xff]
        %v255 = vld [vmem:[%s1 + $0x8] sm:$0xff]
        %v256 = vld [vmem:[%s2] sm:$0xff]
        %v257 = vld [vmem:[%s2 + $0x8] sm:$0xff]
        %259 = vset.pattern.permute.xlu0 0
        %260 = vperm.xlu0 %259, %v256
        %v261 = vpop.permute.xlu0 %260
        %264 = vset.pattern.permute.xlu0 0
        %265 = vperm.xlu0 %264, %v257
        %v266 = vpop.permute.xlu0 %265
        %v268 = vld [vmem:[%s244] sm:$0xff]
        %v269 = vld [vmem:[%s244 + $0x8] sm:$0xff]
        %v270 = vld [vmem:[%s244 + $0x10] sm:$0xff]
        %v271 = vld [vmem:[%s244 + $0x18] sm:$0xff]
        %vm272 = vcmask 261120
        %v274 = vsel %vm272, %v254, 0
        %v277 = vsel %vm272, %v255, 0
        %279 = vmatprep.subr.mxu0 0.0
        %280 = vmatpush1.msra.mxu0 %v268
        %281 = vmatprep.subr.mxu0 0.0
        %282 = vmatpush1.msra.mxu0 %v269
        %283 = vmatprep.subr.mxu0 0.0
        %284 = vmatpush1.msra.mxu0 %v270
        %285 = vmatprep.subr.mxu0 0.0
        %286 = vmatpush1.msra.mxu0 %v271
        %287 = vmatprep.subr.mxu0 0.0
        %288 = vmatpush1.msra.mxu0 0.0
        %289 = vmatprep.subr.mxu0 0.0
        %290 = vmatpush1.msra.mxu0 0.0
        %291 = vmatprep.subr.mxu0 0.0
        %292 = vmatpush1.msra.mxu0 0.0
        %293 = vmatprep.subr.mxu0 0.0
        %294 = vmatpush1.msra.mxu0 0.0
        %295 = vmatprep.subr.mxu0 0.0
        %296 = vmatpush1.msra.mxu0 0.0
        %297 = vmatprep.subr.mxu0 0.0
        %298 = vmatpush1.msra.mxu0 0.0
        %299 = vmatprep.subr.mxu0 0.0
        %300 = vmatpush1.msra.mxu0 0.0
        %301 = vmatprep.subr.mxu0 0.0
        %302 = vmatpush1.msra.mxu0 0.0
        %303 = vmatprep.subr.mxu0 0.0
        %304 = vmatpush1.msra.mxu0 0.0
        %305 = vmatprep.subr.mxu0 0.0
        %306 = vmatpush1.msra.mxu0 0.0
        %307 = vmatprep.subr.mxu0 0.0
        %308 = vmatpush1.msra.mxu0 0.0
        %309 = vmatprep.subr.mxu0 0.0
        %310 = vmatpush1.msra.mxu0 0.0
        %311 = vmatprep.subr.mxu0 0.0
        %312 = vmatpush1.msra.mxu0 0.0
        %313 = vmatprep.subr.mxu0 0.0
        %314 = vmatpush1.msra.mxu0 0.0
        %315 = vmatprep.subr.mxu0 0.0
        %316 = vmatpush1.msra.mxu0 0.0
        %317 = vmatprep.subr.mxu0 0.0
        %318 = vmatpush1.msra.mxu0 0.0
        %319 = vmatprep.subr.mxu0 0.0
        %320 = vmatpush1.msra.mxu0 0.0
        %321 = vmatprep.subr.mxu0 0.0
        %322 = vmatpush1.msra.mxu0 0.0
        %323 = vmatprep.subr.mxu0 0.0
        %324 = vmatpush1.msra.mxu0 0.0
        %325 = vmatprep.subr.mxu0 0.0
        %326 = vmatpush1.msra.mxu0 0.0
        %327 = vmatprep.subr.mxu0 0.0
        %328 = vmatpush1.msra.mxu0 0.0
        %329 = vmatprep.subr.mxu0 0.0
        %330 = vmatpush1.msra.mxu0 0.0
        %331 = vmatprep.subr.mxu0 0.0
        %332 = vmatpush1.msra.mxu0 0.0
        %333 = vmatprep.subr.mxu0 0.0
        %334 = vmatpush1.msra.mxu0 0.0
        %335 = vmatprep.subr.mxu0 0.0
        %336 = vmatpush1.msra.mxu0 0.0
        %337 = vmatprep.subr.mxu0 0.0
        %338 = vmatpush1.msra.mxu0 0.0
        %339 = vmatprep.subr.mxu0 0.0
        %340 = vmatpush1.msra.mxu0 0.0
        %341 = vmatprep.subr.mxu0 0.0
        %342 = vmatpush1.msra.mxu0 0.0
        %343 = vmatprep.mubr.f32.mxu0 0.0
        %344 = vmatmul.mubr.f32.gmra.mrb[0].mxu0 %v274
        %v345 = vpop.f32.mrb[0].mxu0
        %v346 = vadd.f32 %v261, %v345
        %v347 = vpop.f32.mrb[0].mxu0
        %348 = vmatprep.mubr.f32.mxu0 0.0
        %349 = vmatmul.mubr.f32.gmra.mrb[0].mxu0 %v277
        %v350 = vpop.f32.mrb[0].mxu0
        %v351 = vadd.f32 %v266, %v350
        %v352 = vpop.f32.mrb[0].mxu0
        %353 = vdwg.mxu0
        %v354 = vtanh.pop %v346
        %v355 = vxor.u32 %v351, 2147483648
        %v356 = vmul.f32 %v355, 1.442695
        %v357 = vpow.pop %v356
        %v358 = vadd.f32 %v357, 1.0
        %v359 = vrcp.pop %v358
        %v360 = vmul.f32 1.0, %v359
        %v361 = vmul.f32 %v354, 1.442695
        %v362 = vpow.pop %v361
        %vm363 = vcmask 130048
        %v364 = vsel %vm363, %v362, 0.0
        %365 = vadd.xlane.f32.xlu0 %v364
        %v366 = vpop.xlane.xlu0 %365
        %v367 = vrcp.pop %v366
        %v368 = vmul.f32 %v366, %v367
        %v369 = vsub.f32 2.0, %v368
        %v370 = vmul.f32 %v367, %v369
        %v371 = vmul.f32 %v362, %v370
        %372 = vst.msk [vmem:[%s231] sm:$0xff] %vm363, %v371
        %373 = vst.msk [vmem:[%s238] sm:$0xff] %vm363, %v360
        %v374 = vmul.f32 %v362, %v360
        %v375 = vsel %vm363, %v374, 0.0
        %376 = vadd.xlane.f32.xlu0 %v375
        %v377 = vpop.xlane.xlu0 %376
        %v378 = vmul.f32 %v377, %v370
        %vm379 = vcmask 7168
        %380 = vst.msk [vmem:[%s250] sm:$0xff] %vm379, %v378
        %s381 = scalar_lea.vmem %s244, 32
        %v382 = vld [vmem:[%s381] sm:$0xff]
        %v383 = vld [vmem:[%s381 + $0x8] sm:$0xff]
        %v384 = vld [vmem:[%s381 + $0x10] sm:$0xff]
        %v385 = vld [vmem:[%s381 + $0x18] sm:$0xff]
        %386 = vmatprep.subr.mxu0 0.0
        %387 = vmatpush1.msra.mxu0 %v382
        %388 = vmatprep.subr.mxu0 0.0
        %389 = vmatpush1.msra.mxu0 %v383
        %390 = vmatprep.subr.mxu0 0.0
        %391 = vmatpush1.msra.mxu0 %v384
        %392 = vmatprep.subr.mxu0 0.0
        %393 = vmatpush1.msra.mxu0 %v385
        %394 = vmatprep.subr.mxu0 0.0
        %395 = vmatpush1.msra.mxu0 0.0
        %396 = vmatprep.subr.mxu0 0.0
        %397 = vmatpush1.msra.mxu0 0.0
        %398 = vmatprep.subr.mxu0 0.0
        %399 = vmatpush1.msra.mxu0 0.0
        %400 = vmatprep.subr.mxu0 0.0
        %401 = vmatpush1.msra.mxu0 0.0
        %402 = vmatprep.subr.mxu0 0.0
        %403 = vmatpush1.msra.mxu0 0.0
        %404 = vmatprep.subr.mxu0 0.0
        %405 = vmatpush1.msra.mxu0 0.0
        %406 = vmatprep.subr.mxu0 0.0
        %407 = vmatpush1.msra.mxu0 0.0
        %408 = vmatprep.subr.mxu0 0.0
        %409 = vmatpush1.msra.mxu0 0.0
        %410 = vmatprep.subr.mxu0 0.0
        %411 = vmatpush1.msra.mxu0 0.0
        %412 = vmatprep.subr.mxu0 0.0
        %413 = vmatpush1.msra.mxu0 0.0
        %414 = vmatprep.subr.mxu0 0.0
        %415 = vmatpush1.msra.mxu0 0.0
        %416 = vmatprep.subr.mxu0 0.0
        %417 = vmatpush1.msra.mxu0 0.0
        %418 = vmatprep.subr.mxu0 0.0
        %419 = vmatpush1.msra.mxu0 0.0
        %420 = vmatprep.subr.mxu0 0.0
        %421 = vmatpush1.msra.mxu0 0.0
        %422 = vmatprep.subr.mxu0 0.0
        %423 = vmatpush1.msra.mxu0 0.0
        %424 = vmatprep.subr.mxu0 0.0
        %425 = vmatpush1.msra.mxu0 0.0
        %426 = vmatprep.subr.mxu0 0.0
        %427 = vmatpush1.msra.mxu0 0.0
        %428 = vmatprep.subr.mxu0 0.0
        %429 = vmatpush1.msra.mxu0 0.0
        %430 = vmatprep.subr.mxu0 0.0
        %431 = vmatpush1.msra.mxu0 0.0
        %432 = vmatprep.subr.mxu0 0.0
        %433 = vmatpush1.msra.mxu0 0.0
        %434 = vmatprep.subr.mxu0 0.0
        %435 = vmatpush1.msra.mxu0 0.0
        %436 = vmatprep.subr.mxu0 0.0
        %437 = vmatpush1.msra.mxu0 0.0
        %438 = vmatprep.subr.mxu0 0.0
        %439 = vmatpush1.msra.mxu0 0.0
        %440 = vmatprep.subr.mxu0 0.0
        %441 = vmatpush1.msra.mxu0 0.0
        %442 = vmatprep.subr.mxu0 0.0
        %443 = vmatpush1.msra.mxu0 0.0
        %444 = vmatprep.subr.mxu0 0.0
        %445 = vmatpush1.msra.mxu0 0.0
        %446 = vmatprep.subr.mxu0 0.0
        %447 = vmatpush1.msra.mxu0 0.0
        %448 = vmatprep.subr.mxu0 0.0
        %449 = vmatpush1.msra.mxu0 0.0
        %450 = vmatprep.mubr.f32.mxu0 0.0
        %451 = vmatmul.mubr.f32.gmra.mrb[0].mxu0 %v274
        %v452 = vpop.f32.mrb[0].mxu0
        %v453 = vadd.f32 %v261, %v452
        %v454 = vpop.f32.mrb[0].mxu0
        %455 = vmatprep.mubr.f32.mxu0 0.0
        %456 = vmatmul.mubr.f32.gmra.mrb[0].mxu0 %v277
        %v457 = vpop.f32.mrb[0].mxu0
        %v458 = vadd.f32 %v266, %v457
        %v459 = vpop.f32.mrb[0].mxu0
        %460 = vdwg.mxu0
        %v461 = vtanh.pop %v453
        %v462 = vxor.u32 %v458, 2147483648
        %v463 = vmul.f32 %v462, 1.442695
        %v464 = vpow.pop %v463
        %v465 = vadd.f32 %v464, 1.0
        %v466 = vrcp.pop %v465
        %v467 = vmul.f32 1.0, %v466
        %v468 = vmul.f32 %v461, 1.442695
        %v469 = vpow.pop %v468
        %v470 = vsel %vm363, %v469, 0.0
        %471 = vadd.xlane.f32.xlu0 %v470
        %v472 = vpop.xlane.xlu0 %471
        %v473 = vrcp.pop %v472
        %v474 = vmul.f32 %v472, %v473
        %v475 = vsub.f32 2.0, %v474
        %v476 = vmul.f32 %v473, %v475
        %v477 = vmul.f32 %v469, %v476
        %s478 = scalar_lea.vmem %s231, 8 [#allocation2]
        %479 = vst.msk [vmem:[%s478] sm:$0xff] %vm363, %v477
        %s480 = scalar_lea.vmem %s238, 8 [#allocation4]
        %481 = vst.msk [vmem:[%s480] sm:$0xff] %vm363, %v467
        %v482 = vmul.f32 %v469, %v467
        %v483 = vsel %vm363, %v482, 0.0
        %484 = vadd.xlane.f32.xlu0 %v483
        %v485 = vpop.xlane.xlu0 %484
        %v486 = vmul.f32 %v485, %v476
        %s487 = scalar_lea.vmem %s250, 8
        %488 = vst.msk [vmem:[%s487] sm:$0xff] %vm379, %v486
        %s489 = scalar_lea.vmem %s244, 64
        %v490 = vld [vmem:[%s489] sm:$0xff]
        %v491 = vld [vmem:[%s489 + $0x8] sm:$0xff]
        %v492 = vld [vmem:[%s489 + $0x10] sm:$0xff]
        %v493 = vld [vmem:[%s489 + $0x18] sm:$0xff]
        %494 = vmatprep.subr.mxu0 0.0
        %495 = vmatpush1.msra.mxu0 %v490
        %496 = vmatprep.subr.mxu0 0.0
        %497 = vmatpush1.msra.mxu0 %v491
        %498 = vmatprep.subr.mxu0 0.0
        %499 = vmatpush1.msra.mxu0 %v492
        %500 = vmatprep.subr.mxu0 0.0
        %501 = vmatpush1.msra.mxu0 %v493
        %502 = vmatprep.subr.mxu0 0.0
        %503 = vmatpush1.msra.mxu0 0.0
        %504 = vmatprep.subr.mxu0 0.0
        %505 = vmatpush1.msra.mxu0 0.0
        %506 = vmatprep.subr.mxu0 0.0
        %507 = vmatpush1.msra.mxu0 0.0
        %508 = vmatprep.subr.mxu0 0.0
        %509 = vmatpush1.msra.mxu0 0.0
        %510 = vmatprep.subr.mxu0 0.0
        %511 = vmatpush1.msra.mxu0 0.0
        %512 = vmatprep.subr.mxu0 0.0
        %513 = vmatpush1.msra.mxu0 0.0
        %514 = vmatprep.subr.mxu0 0.0
        %515 = vmatpush1.msra.mxu0 0.0
        %516 = vmatprep.subr.mxu0 0.0
        %517 = vmatpush1.msra.mxu0 0.0
        %518 = vmatprep.subr.mxu0 0.0
        %519 = vmatpush1.msra.mxu0 0.0
        %520 = vmatprep.subr.mxu0 0.0
        %521 = vmatpush1.msra.mxu0 0.0
        %522 = vmatprep.subr.mxu0 0.0
        %523 = vmatpush1.msra.mxu0 0.0
        %524 = vmatprep.subr.mxu0 0.0
        %525 = vmatpush1.msra.mxu0 0.0
        %526 = vmatprep.subr.mxu0 0.0
        %527 = vmatpush1.msra.mxu0 0.0
        %528 = vmatprep.subr.mxu0 0.0
        %529 = vmatpush1.msra.mxu0 0.0
        %530 = vmatprep.subr.mxu0 0.0
        %531 = vmatpush1.msra.mxu0 0.0
        %532 = vmatprep.subr.mxu0 0.0
        %533 = vmatpush1.msra.mxu0 0.0
        %534 = vmatprep.subr.mxu0 0.0
        %535 = vmatpush1.msra.mxu0 0.0
        %536 = vmatprep.subr.mxu0 0.0
        %537 = vmatpush1.msra.mxu0 0.0
        %538 = vmatprep.subr.mxu0 0.0
        %539 = vmatpush1.msra.mxu0 0.0
        %540 = vmatprep.subr.mxu0 0.0
        %541 = vmatpush1.msra.mxu0 0.0
        %542 = vmatprep.subr.mxu0 0.0
        %543 = vmatpush1.msra.mxu0 0.0
        %544 = vmatprep.subr.mxu0 0.0
        %545 = vmatpush1.msra.mxu0 0.0
        %546 = vmatprep.subr.mxu0 0.0
        %547 = vmatpush1.msra.mxu0 0.0
        %548 = vmatprep.subr.mxu0 0.0
        %549 = vmatpush1.msra.mxu0 0.0
        %550 = vmatprep.subr.mxu0 0.0
        %551 = vmatpush1.msra.mxu0 0.0
        %552 = vmatprep.subr.mxu0 0.0
        %553 = vmatpush1.msra.mxu0 0.0
        %554 = vmatprep.subr.mxu0 0.0
        %555 = vmatpush1.msra.mxu0 0.0
        %556 = vmatprep.subr.mxu0 0.0
        %557 = vmatpush1.msra.mxu0 0.0
        %558 = vmatprep.mubr.f32.mxu0 0.0
        %559 = vmatmul.mubr.f32.gmra.mrb[0].mxu0 %v274
        %v560 = vpop.f32.mrb[0].mxu0
        %v561 = vadd.f32 %v261, %v560
        %v562 = vpop.f32.mrb[0].mxu0
        %563 = vmatprep.mubr.f32.mxu0 0.0
        %564 = vmatmul.mubr.f32.gmra.mrb[0].mxu0 %v277
        %v565 = vpop.f32.mrb[0].mxu0
        %v566 = vadd.f32 %v266, %v565
        %v567 = vpop.f32.mrb[0].mxu0
        %568 = vdwg.mxu0
        %v569 = vtanh.pop %v561
        %v570 = vxor.u32 %v566, 2147483648
        %v571 = vmul.f32 %v570, 1.442695
        %v572 = vpow.pop %v571
        %v573 = vadd.f32 %v572, 1.0
        %v574 = vrcp.pop %v573
        %v575 = vmul.f32 1.0, %v574
        %v576 = vmul.f32 %v569, 1.442695
        %v577 = vpow.pop %v576
        %v578 = vsel %vm363, %v577, 0.0
        %579 = vadd.xlane.f32.xlu0 %v578
        %v580 = vpop.xlane.xlu0 %579
        %v581 = vrcp.pop %v580
        %v582 = vmul.f32 %v580, %v581
        %v583 = vsub.f32 2.0, %v582
        %v584 = vmul.f32 %v581, %v583
        %v585 = vmul.f32 %v577, %v584
        %s586 = scalar_lea.vmem %s231, 16 [#allocation2]
        %587 = vst.msk [vmem:[%s586] sm:$0xff] %vm363, %v585
        %s588 = scalar_lea.vmem %s238, 16 [#allocation4]
        %589 = vst.msk [vmem:[%s588] sm:$0xff] %vm363, %v575
        %v590 = vmul.f32 %v577, %v575
        %v591 = vsel %vm363, %v590, 0.0
        %592 = vadd.xlane.f32.xlu0 %v591
        %v593 = vpop.xlane.xlu0 %592
        %v594 = vmul.f32 %v593, %v584
        %s595 = scalar_lea.vmem %s250, 16
        %596 = vst.msk [vmem:[%s595] sm:$0xff] %vm379, %v594
        %s597 = scalar_lea.vmem %s244, 96
        %v598 = vld [vmem:[%s597] sm:$0xff]
        %v599 = vld [vmem:[%s597 + $0x8] sm:$0xff]
        %v600 = vld [vmem:[%s597 + $0x10] sm:$0xff]
        %v601 = vld [vmem:[%s597 + $0x18] sm:$0xff]
        %602 = vmatprep.subr.mxu0 0.0
        %603 = vmatpush1.msra.mxu0 %v598
        %604 = vmatprep.subr.mxu0 0.0
        %605 = vmatpush1.msra.mxu0 %v599
        %606 = vmatprep.subr.mxu0 0.0
        %607 = vmatpush1.msra.mxu0 %v600
        %608 = vmatprep.subr.mxu0 0.0
        %609 = vmatpush1.msra.mxu0 %v601
        %610 = vmatprep.subr.mxu0 0.0
        %611 = vmatpush1.msra.mxu0 0.0
        %612 = vmatprep.subr.mxu0 0.0
        %613 = vmatpush1.msra.mxu0 0.0
        %614 = vmatprep.subr.mxu0 0.0
        %615 = vmatpush1.msra.mxu0 0.0
        %616 = vmatprep.subr.mxu0 0.0
        %617 = vmatpush1.msra.mxu0 0.0
        %618 = vmatprep.subr.mxu0 0.0
        %619 = vmatpush1.msra.mxu0 0.0
        %620 = vmatprep.subr.mxu0 0.0
        %621 = vmatpush1.msra.mxu0 0.0
        %622 = vmatprep.subr.mxu0 0.0
        %623 = vmatpush1.msra.mxu0 0.0
        %624 = vmatprep.subr.mxu0 0.0
        %625 = vmatpush1.msra.mxu0 0.0
        %626 = vmatprep.subr.mxu0 0.0
        %627 = vmatpush1.msra.mxu0 0.0
        %628 = vmatprep.subr.mxu0 0.0
        %629 = vmatpush1.msra.mxu0 0.0
        %630 = vmatprep.subr.mxu0 0.0
        %631 = vmatpush1.msra.mxu0 0.0
        %632 = vmatprep.subr.mxu0 0.0
        %633 = vmatpush1.msra.mxu0 0.0
        %634 = vmatprep.subr.mxu0 0.0
        %635 = vmatpush1.msra.mxu0 0.0
        %636 = vmatprep.subr.mxu0 0.0
        %637 = vmatpush1.msra.mxu0 0.0
        %638 = vmatprep.subr.mxu0 0.0
        %639 = vmatpush1.msra.mxu0 0.0
        %640 = vmatprep.subr.mxu0 0.0
        %641 = vmatpush1.msra.mxu0 0.0
        %642 = vmatprep.subr.mxu0 0.0
        %643 = vmatpush1.msra.mxu0 0.0
        %644 = vmatprep.subr.mxu0 0.0
        %645 = vmatpush1.msra.mxu0 0.0
        %646 = vmatprep.subr.mxu0 0.0
        %647 = vmatpush1.msra.mxu0 0.0
        %648 = vmatprep.subr.mxu0 0.0
        %649 = vmatpush1.msra.mxu0 0.0
        %650 = vmatprep.subr.mxu0 0.0
        %651 = vmatpush1.msra.mxu0 0.0
        %652 = vmatprep.subr.mxu0 0.0
        %653 = vmatpush1.msra.mxu0 0.0
        %654 = vmatprep.subr.mxu0 0.0
        %655 = vmatpush1.msra.mxu0 0.0
        %656 = vmatprep.subr.mxu0 0.0
        %657 = vmatpush1.msra.mxu0 0.0
        %658 = vmatprep.subr.mxu0 0.0
        %659 = vmatpush1.msra.mxu0 0.0
        %660 = vmatprep.subr.mxu0 0.0
        %661 = vmatpush1.msra.mxu0 0.0
        %662 = vmatprep.subr.mxu0 0.0
        %663 = vmatpush1.msra.mxu0 0.0
        %664 = vmatprep.subr.mxu0 0.0
        %665 = vmatpush1.msra.mxu0 0.0
        %666 = vmatprep.mubr.f32.mxu0 0.0
        %667 = vmatmul.mubr.f32.gmra.mrb[0].mxu0 %v274
        %v668 = vpop.f32.mrb[0].mxu0
        %v669 = vadd.f32 %v261, %v668
        %v670 = vpop.f32.mrb[0].mxu0
        %671 = vmatprep.mubr.f32.mxu0 0.0
        %672 = vmatmul.mubr.f32.gmra.mrb[0].mxu0 %v277
        %v673 = vpop.f32.mrb[0].mxu0
        %v674 = vadd.f32 %v266, %v673
        %v675 = vpop.f32.mrb[0].mxu0
        %676 = vdwg.mxu0
        %v677 = vtanh.pop %v669
        %v678 = vxor.u32 %v674, 2147483648
        %v679 = vmul.f32 %v678, 1.442695
        %v680 = vpow.pop %v679
        %v681 = vadd.f32 %v680, 1.0
        %v682 = vrcp.pop %v681
        %v683 = vmul.f32 1.0, %v682
        %v684 = vmul.f32 %v677, 1.442695
        %v685 = vpow.pop %v684
        %v686 = vsel %vm363, %v685, 0.0
        %687 = vadd.xlane.f32.xlu0 %v686
        %v688 = vpop.xlane.xlu0 %687
        %v689 = vrcp.pop %v688
        %v690 = vmul.f32 %v688, %v689
        %v691 = vsub.f32 2.0, %v690
        %v692 = vmul.f32 %v689, %v691
        %v693 = vmul.f32 %v685, %v692
        %s694 = scalar_lea.vmem %s231, 24 [#allocation2]
        %695 = vst.msk [vmem:[%s694] sm:$0xff] %vm363, %v693
        %s696 = scalar_lea.vmem %s238, 24 [#allocation4]
        %697 = vst.msk [vmem:[%s696] sm:$0xff] %vm363, %v683
        %v698 = vmul.f32 %v685, %v683
        %v699 = vsel %vm363, %v698, 0.0
        %700 = vadd.xlane.f32.xlu0 %v699
        %v701 = vpop.xlane.xlu0 %700
        %v702 = vmul.f32 %v701, %v692
        %s703 = scalar_lea.vmem %s250, 24
        %704 = vst.msk [vmem:[%s703] sm:$0xff] %vm379, %v702
        %s705 = scalar_lea.vmem %s244, 128
        %v706 = vld [vmem:[%s705] sm:$0xff]
        %v707 = vld [vmem:[%s705 + $0x8] sm:$0xff]
        %v708 = vld [vmem:[%s705 + $0x10] sm:$0xff]
        %v709 = vld [vmem:[%s705 + $0x18] sm:$0xff]
        %710 = vmatprep.subr.mxu0 0.0
        %711 = vmatpush1.msra.mxu0 %v706
        %712 = vmatprep.subr.mxu0 0.0
        %713 = vmatpush1.msra.mxu0 %v707
        %714 = vmatprep.subr.mxu0 0.0
        %715 = vmatpush1.msra.mxu0 %v708
        %716 = vmatprep.subr.mxu0 0.0
        %717 = vmatpush1.msra.mxu0 %v709
        %718 = vmatprep.subr.mxu0 0.0
        %719 = vmatpush1.msra.mxu0 0.0
        %720 = vmatprep.subr.mxu0 0.0
        %721 = vmatpush1.msra.mxu0 0.0
        %722 = vmatprep.subr.mxu0 0.0
        %723 = vmatpush1.msra.mxu0 0.0
        %724 = vmatprep.subr.mxu0 0.0
        %725 = vmatpush1.msra.mxu0 0.0
        %726 = vmatprep.subr.mxu0 0.0
        %727 = vmatpush1.msra.mxu0 0.0
        %728 = vmatprep.subr.mxu0 0.0
        %729 = vmatpush1.msra.mxu0 0.0
        %730 = vmatprep.subr.mxu0 0.0
        %731 = vmatpush1.msra.mxu0 0.0
        %732 = vmatprep.subr.mxu0 0.0
        %733 = vmatpush1.msra.mxu0 0.0
        %734 = vmatprep.subr.mxu0 0.0
        %735 = vmatpush1.msra.mxu0 0.0
        %736 = vmatprep.subr.mxu0 0.0
        %737 = vmatpush1.msra.mxu0 0.0
        %738 = vmatprep.subr.mxu0 0.0
        %739 = vmatpush1.msra.mxu0 0.0
        %740 = vmatprep.subr.mxu0 0.0
        %741 = vmatpush1.msra.mxu0 0.0
        %742 = vmatprep.subr.mxu0 0.0
        %743 = vmatpush1.msra.mxu0 0.0
        %744 = vmatprep.subr.mxu0 0.0
        %745 = vmatpush1.msra.mxu0 0.0
        %746 = vmatprep.subr.mxu0 0.0
        %747 = vmatpush1.msra.mxu0 0.0
        %748 = vmatprep.subr.mxu0 0.0
        %749 = vmatpush1.msra.mxu0 0.0
        %750 = vmatprep.subr.mxu0 0.0
        %751 = vmatpush1.msra.mxu0 0.0
        %752 = vmatprep.subr.mxu0 0.0
        %753 = vmatpush1.msra.mxu0 0.0
        %754 = vmatprep.subr.mxu0 0.0
        %755 = vmatpush1.msra.mxu0 0.0
        %756 = vmatprep.subr.mxu0 0.0
        %757 = vmatpush1.msra.mxu0 0.0
        %758 = vmatprep.subr.mxu0 0.0
        %759 = vmatpush1.msra.mxu0 0.0
        %760 = vmatprep.subr.mxu0 0.0
        %761 = vmatpush1.msra.mxu0 0.0
        %762 = vmatprep.subr.mxu0 0.0
        %763 = vmatpush1.msra.mxu0 0.0
        %764 = vmatprep.subr.mxu0 0.0
        %765 = vmatpush1.msra.mxu0 0.0
        %766 = vmatprep.subr.mxu0 0.0
        %767 = vmatpush1.msra.mxu0 0.0
        %768 = vmatprep.subr.mxu0 0.0
        %769 = vmatpush1.msra.mxu0 0.0
        %770 = vmatprep.subr.mxu0 0.0
        %771 = vmatpush1.msra.mxu0 0.0
        %772 = vmatprep.subr.mxu0 0.0
        %773 = vmatpush1.msra.mxu0 0.0
        %774 = vmatprep.mubr.f32.mxu0 0.0
        %775 = vmatmul.mubr.f32.gmra.mrb[0].mxu0 %v274
        %v776 = vpop.f32.mrb[0].mxu0
        %v777 = vadd.f32 %v261, %v776
        %v778 = vpop.f32.mrb[0].mxu0
        %779 = vmatprep.mubr.f32.mxu0 0.0
        %780 = vmatmul.mubr.f32.gmra.mrb[0].mxu0 %v277
        %v781 = vpop.f32.mrb[0].mxu0
        %v782 = vadd.f32 %v266, %v781
        %v783 = vpop.f32.mrb[0].mxu0
        %784 = vdwg.mxu0
        %v785 = vtanh.pop %v777
        %v786 = vxor.u32 %v782, 2147483648
        %v787 = vmul.f32 %v786, 1.442695
        %v788 = vpow.pop %v787
        %v789 = vadd.f32 %v788, 1.0
        %v790 = vrcp.pop %v789
        %v791 = vmul.f32 1.0, %v790
        %v792 = vmul.f32 %v785, 1.442695
        %v793 = vpow.pop %v792
        %v794 = vsel %vm363, %v793, 0.0
        %795 = vadd.xlane.f32.xlu0 %v794
        %v796 = vpop.xlane.xlu0 %795
        %v797 = vrcp.pop %v796
        %v798 = vmul.f32 %v796, %v797
        %v799 = vsub.f32 2.0, %v798
        %v800 = vmul.f32 %v797, %v799
        %v801 = vmul.f32 %v793, %v800
        %s802 = scalar_lea.vmem %s231, 32 [#allocation2]
        %803 = vst.msk [vmem:[%s802] sm:$0xff] %vm363, %v801
        %s804 = scalar_lea.vmem %s238, 32 [#allocation4]
        %805 = vst.msk [vmem:[%s804] sm:$0xff] %vm363, %v791
        %v806 = vmul.f32 %v793, %v791
        %v807 = vsel %vm363, %v806, 0.0
        %808 = vadd.xlane.f32.xlu0 %v807
        %v809 = vpop.xlane.xlu0 %808
        %v810 = vmul.f32 %v809, %v800
        %s811 = scalar_lea.vmem %s250, 32
        %812 = vst.msk [vmem:[%s811] sm:$0xff] %vm379, %v810
        %s813 = scalar_lea.vmem %s244, 160
        %v814 = vld [vmem:[%s813] sm:$0xff]
        %v815 = vld [vmem:[%s813 + $0x8] sm:$0xff]
        %v816 = vld [vmem:[%s813 + $0x10] sm:$0xff]
        %v817 = vld [vmem:[%s813 + $0x18] sm:$0xff]
        %818 = vmatprep.subr.mxu0 0.0
        %819 = vmatpush1.msra.mxu0 %v814
        %820 = vmatprep.subr.mxu0 0.0
        %821 = vmatpush1.msra.mxu0 %v815
        %822 = vmatprep.subr.mxu0 0.0
        %823 = vmatpush1.msra.mxu0 %v816
        %824 = vmatprep.subr.mxu0 0.0
        %825 = vmatpush1.msra.mxu0 %v817
        %826 = vmatprep.subr.mxu0 0.0
        %827 = vmatpush1.msra.mxu0 0.0
        %828 = vmatprep.subr.mxu0 0.0
        %829 = vmatpush1.msra.mxu0 0.0
        %830 = vmatprep.subr.mxu0 0.0
        %831 = vmatpush1.msra.mxu0 0.0
        %832 = vmatprep.subr.mxu0 0.0
        %833 = vmatpush1.msra.mxu0 0.0
        %834 = vmatprep.subr.mxu0 0.0
        %835 = vmatpush1.msra.mxu0 0.0
        %836 = vmatprep.subr.mxu0 0.0
        %837 = vmatpush1.msra.mxu0 0.0
        %838 = vmatprep.subr.mxu0 0.0
        %839 = vmatpush1.msra.mxu0 0.0
        %840 = vmatprep.subr.mxu0 0.0
        %841 = vmatpush1.msra.mxu0 0.0
        %842 = vmatprep.subr.mxu0 0.0
        %843 = vmatpush1.msra.mxu0 0.0
        %844 = vmatprep.subr.mxu0 0.0
        %845 = vmatpush1.msra.mxu0 0.0
        %846 = vmatprep.subr.mxu0 0.0
        %847 = vmatpush1.msra.mxu0 0.0
        %848 = vmatprep.subr.mxu0 0.0
        %849 = vmatpush1.msra.mxu0 0.0
        %850 = vmatprep.subr.mxu0 0.0
        %851 = vmatpush1.msra.mxu0 0.0
        %852 = vmatprep.subr.mxu0 0.0
        %853 = vmatpush1.msra.mxu0 0.0
        %854 = vmatprep.subr.mxu0 0.0
        %855 = vmatpush1.msra.mxu0 0.0
        %856 = vmatprep.subr.mxu0 0.0
        %857 = vmatpush1.msra.mxu0 0.0
        %858 = vmatprep.subr.mxu0 0.0
        %859 = vmatpush1.msra.mxu0 0.0
        %860 = vmatprep.subr.mxu0 0.0
        %861 = vmatpush1.msra.mxu0 0.0
        %862 = vmatprep.subr.mxu0 0.0
        %863 = vmatpush1.msra.mxu0 0.0
        %864 = vmatprep.subr.mxu0 0.0
        %865 = vmatpush1.msra.mxu0 0.0
        %866 = vmatprep.subr.mxu0 0.0
        %867 = vmatpush1.msra.mxu0 0.0
        %868 = vmatprep.subr.mxu0 0.0
        %869 = vmatpush1.msra.mxu0 0.0
        %870 = vmatprep.subr.mxu0 0.0
        %871 = vmatpush1.msra.mxu0 0.0
        %872 = vmatprep.subr.mxu0 0.0
        %873 = vmatpush1.msra.mxu0 0.0
        %874 = vmatprep.subr.mxu0 0.0
        %875 = vmatpush1.msra.mxu0 0.0
        %876 = vmatprep.subr.mxu0 0.0
        %877 = vmatpush1.msra.mxu0 0.0
        %878 = vmatprep.subr.mxu0 0.0
        %879 = vmatpush1.msra.mxu0 0.0
        %880 = vmatprep.subr.mxu0 0.0
        %881 = vmatpush1.msra.mxu0 0.0
        %882 = vmatprep.mubr.f32.mxu0 0.0
        %883 = vmatmul.mubr.f32.gmra.mrb[0].mxu0 %v274
        %v884 = vpop.f32.mrb[0].mxu0
        %v885 = vadd.f32 %v261, %v884
        %v886 = vpop.f32.mrb[0].mxu0
        %887 = vmatprep.mubr.f32.mxu0 0.0
        %888 = vmatmul.mubr.f32.gmra.mrb[0].mxu0 %v277
        %v889 = vpop.f32.mrb[0].mxu0
        %v890 = vadd.f32 %v266, %v889
        %v891 = vpop.f32.mrb[0].mxu0
        %892 = vdwg.mxu0
        %v893 = vtanh.pop %v885
        %v894 = vxor.u32 %v890, 2147483648
        %v895 = vmul.f32 %v894, 1.442695
        %v896 = vpow.pop %v895
        %v897 = vadd.f32 %v896, 1.0
        %v898 = vrcp.pop %v897
        %v899 = vmul.f32 1.0, %v898
        %v900 = vmul.f32 %v893, 1.442695
        %v901 = vpow.pop %v900
        %v902 = vsel %vm363, %v901, 0.0
        %903 = vadd.xlane.f32.xlu0 %v902
        %v904 = vpop.xlane.xlu0 %903
        %v905 = vrcp.pop %v904
        %v906 = vmul.f32 %v904, %v905
        %v907 = vsub.f32 2.0, %v906
        %v908 = vmul.f32 %v905, %v907
        %v909 = vmul.f32 %v901, %v908
        %s910 = scalar_lea.vmem %s231, 40 [#allocation2]
        %911 = vst.msk [vmem:[%s910] sm:$0xff] %vm363, %v909
        %s912 = scalar_lea.vmem %s238, 40 [#allocation4]
        %913 = vst.msk [vmem:[%s912] sm:$0xff] %vm363, %v899
        %v914 = vmul.f32 %v901, %v899
        %v915 = vsel %vm363, %v914, 0.0
        %916 = vadd.xlane.f32.xlu0 %v915
        %v917 = vpop.xlane.xlu0 %916
        %v918 = vmul.f32 %v917, %v908
        %s919 = scalar_lea.vmem %s250, 40
        %920 = vst.msk [vmem:[%s919] sm:$0xff] %vm379, %v918
        %s921 = smul.u32 6, %s23
        %p922 = scmp.lt.s32.totalorder %s921, 11
        %s923 = scalar_select %p922, %s921, 11
        %s924 = smul.addr %s923, 8
        %s925 = scalar_lea.vmem %s3, %s924
        %s926 = sand.u32 %s125, 1
        %s927 = scalar_lea.sflag [#allocation3], %s926
        %s928 = sand.u32 %s125, 1
        %s929 = smul.addr %s928, 48
        %s930 = scalar_lea.vmem [#allocation2], %s929
        %s931 = sand.u32 %s151, 1
        %s932 = scalar_lea.sflag [#allocation5], %s931
        %s933 = sand.u32 %s151, 1
        %s934 = smul.addr %s933, 48
        %s935 = scalar_lea.vmem [#allocation4], %s934
        // Predicated region
        $region33: #{tpu_custom_call.1} parent=31 // pred_check
          %p936 = pneg %p109
        $region34: #{tpu_custom_call.1} parent=31 // pred_check_branch
          %938 = sbr.rel (%p936) target = $region36
        $region35: #{tpu_custom_call.1} parent=31 // pred_region
          %s939 = smul.u32 6, %s23
        $region36: #{tpu_custom_call.1} parent=31 // pred_fallthru
          _
        // Predicated region
        $region37: #{tpu_custom_call.1} parent=31 // pred_check
          %p940 = pneg %p135
        $region38: #{tpu_custom_call.1} parent=31 // pred_check_branch
          %942 = sbr.rel (%p940) target = $region40
        $region39: #{tpu_custom_call.1} parent=31 // pred_region
          %s943 = smul.u32 6, %s23
          %s945 = ssub.s32 768, 768
          %946 = vsyncadd %s927, %s945
          %s947 = smul.addr %s943, 128
          %s948 = scalar_lea.hbm %s4, %s947
          %s949 = sshll.u32 %s930, 4
          %s950 = int_to_ptr.vmem [resolvable:$true] %s949
          %955 = dma.vmem_to_hbm [thread:$0]  %s950, 768, %s948, %s927, 128, 128, 8
        $region40: #{tpu_custom_call.1} parent=31 // pred_fallthru
          _
        // Predicated region
        $region41: #{tpu_custom_call.1} parent=31 // pred_check
          %p956 = pneg %p161
        $region42: #{tpu_custom_call.1} parent=31 // pred_check_branch
          %958 = sbr.rel (%p956) target = $region44
        $region43: #{tpu_custom_call.1} parent=31 // pred_region
          %s959 = smul.u32 6, %s23
          %s961 = ssub.s32 768, 768
          %962 = vsyncadd %s932, %s961
          %s963 = smul.addr %s959, 128
          %s964 = scalar_lea.hbm %s5, %s963
          %s965 = sshll.u32 %s935, 4
          %s966 = int_to_ptr.vmem [resolvable:$true] %s965
          %971 = dma.vmem_to_hbm [thread:$0]  %s966, 768, %s964, %s932, 128, 128, 8
        $region44: #{tpu_custom_call.1} parent=31 // pred_fallthru
          _
      $region32: #{tpu_custom_call.1} parent=5 // pred_fallthru
        _
      %p972 = scmp.le.s32.totalorder 2, %s18
      // Predicated region
      $region45: #{tpu_custom_call.1} parent=5 // pred_check
        %p973 = pneg %p972
      $region46: #{tpu_custom_call.1} parent=5 // pred_check_branch
        %975 = sbr.rel (%p973) target = $region48
      $region47: #{tpu_custom_call.1} parent=5 // pred_region
        %s976 = ssub.s32 %s18, 2
        // Predicated region
        $region49: #{tpu_custom_call.1} parent=47 // pred_check
          %p977 = pneg %p115
        $region50: #{tpu_custom_call.1} parent=47 // pred_check_branch
          %979 = sbr.rel (%p977) target = $region52
        $region51: #{tpu_custom_call.1} parent=47 // pred_region
          %s980 = smul.u32 6, %s24
          %p981 = scmp.lt.s32.totalorder %s980, 11
          %s982 = scalar_select %p981, %s980, 11
          %s983 = smul.addr %s982, 8
          %s984 = scalar_lea.vmem %s3, %s983
        $region52: #{tpu_custom_call.1} parent=47 // pred_fallthru
          _
        // Predicated region
        $region53: #{tpu_custom_call.1} parent=47 // pred_check
          %p985 = pneg %p141
        $region54: #{tpu_custom_call.1} parent=47 // pred_check_branch
          %987 = sbr.rel (%p985) target = $region56
        $region55: #{tpu_custom_call.1} parent=47 // pred_region
          %s988 = sand.u32 %s126, 1
          %s989 = scalar_lea.sflag [#allocation3], %s988
          %s990 = sand.u32 %s126, 1
          %s991 = smul.addr %s990, 48
          %s992 = scalar_lea.vmem [#allocation2], %s991
          %993 = dma.done %s989, 768
        $region56: #{tpu_custom_call.1} parent=47 // pred_fallthru
          _
        // Predicated region
        $region57: #{tpu_custom_call.1} parent=47 // pred_check
          %p994 = pneg %p167
        $region58: #{tpu_custom_call.1} parent=47 // pred_check_branch
          %996 = sbr.rel (%p994) target = $region60
        $region59: #{tpu_custom_call.1} parent=47 // pred_region
          %s997 = sand.u32 %s152, 1
          %s998 = scalar_lea.sflag [#allocation5], %s997
          %s999 = sand.u32 %s152, 1
          %s1000 = smul.addr %s999, 48
          %s1001 = scalar_lea.vmem [#allocation4], %s1000
          %1002 = dma.done %s998, 768
        $region60: #{tpu_custom_call.1} parent=47 // pred_fallthru
          _
      $region48: #{tpu_custom_call.1} parent=5 // pred_fallthru
        _
    $region6: #{tpu_custom_call.1} parent=1 // loop_footer
      %s22 = sadd.s32 1, %s18
    $region7: #{tpu_custom_call.1} parent=1 // loop_footer_branch
      %17 = sbr.rel target = $region3
    $region8: #{tpu_custom_call.1} parent=1 // loop_exit
      _
    %1003 = vsyncpa [#allocation3], 1
    %s1004 = scalar_lea.sflag [#allocation3], 1
    %1005 = vsyncpa %s1004, 1
    %1006 = vsyncpa [#allocation5], 1
    %s1007 = scalar_lea.sflag [#allocation5], 1
    %1008 = vsyncpa %s1007, 1

// kernel: tpu_custom_call.1
$region0: #{tpu_custom_call.1}
  #allocation0 [shape = 'u32[]', space=smem, size = 0x4, offset = 0x4, fixed_abs, tag = 'smem constant byte address 0x4 - core index']
  #allocation1 [shape = 'u32[144,128]{1,0:T(1,128)}', space=vmem, size = 0x12000, scoped, tag = 'internal scratch']
  %s0 = inlined_call_operand.vmem [shape: f32[12,32,16], index: 0, kind: input, shape index: {}]
  %s1 = inlined_call_operand.vmem [shape: f32[16,32], index: 1, kind: input, shape index: {}]
  %s2 = inlined_call_operand.vmem [shape: f32[16,1], index: 2, kind: input, shape index: {}]
  %s3 = inlined_call_operand.vmem [shape: f32[12,8,1], index: 3, kind: output, shape index: {0}]
  %s4 = inlined_call_operand.hbm [shape: f32[12,8,16], index: 4, kind: output, shape index: {1}]
  %s5 = inlined_call_operand.hbm [shape: f32[12,8,16], index: 5, kind: output, shape index: {2}]
  %6 = xla_tuple %s3, %s4, %s5
  %s7 = sld [smem:[#allocation0]]
  $region61: #{tpu_custom_call.1} parent=0
    _
  %s9 = ssub.s32 1, %s7
  %s10 = scalar_select 0, %s9, %s7
  $region1: #{tpu_custom_call.1} parent=0
    #allocation2 [shape = 'u8[49152]{0}', space=vmem, size = 0xc000, scoped, tag = 'output window, operand 1']
    #allocation3 [shape = 's32[2]{0}', space=sflag, size = 0x8, scoped, tag = 'scoped memory for tpu_custom_call.1']
    #allocation4 [shape = 'u8[49152]{0}', space=vmem, size = 0xc000, scoped, tag = 'output window, operand 2']
    #allocation5 [shape = 's32[2]{0}', space=sflag, size = 0x8, scoped, tag = 'scoped memory for tpu_custom_call.1']
    %11 = vsyncpa [#allocation3], 0
    %s12 = scalar_lea.sflag [#allocation3], 1
    %13 = vsyncpa %s12, 0
    %14 = vsyncpa [#allocation5], 0
    %s15 = scalar_lea.sflag [#allocation5], 1
    %16 = vsyncpa %s15, 0
    loop: start=0, step=1, limit=4
    $region2: #{tpu_custom_call.1} parent=1 // loop_pre_header
      _
    $region3: #{tpu_custom_call.1} parent=1 // loop_header
      %s18 = sphi 0, %s22
      %p19 = scmp.ge.s32.totalorder %s18, 4
      %s28 = sphi 0, %s30
      %s31 = sphi 0, %s28
      %s32 = sphi 0, %s31
      %s48 = sphi 0, %s32
      %s52 = sphi 0, %s52
      %s54 = sphi 0, %s52
      %s55 = sphi 0, %s54
      %s69 = sphi 0, %s55
      %s73 = sphi 0, %s73
      %s75 = sphi 0, %s73
      %s76 = sphi 0, %s75
      %s90 = sphi 0, %s76
      %s96 = sphi 0, %s98
      %s99 = sphi 0, %s96
      %s100 = sphi 0, %s99
      %s116 = sphi 0, %s100
      %s122 = sphi 0, %s124
      %s125 = sphi 0, %s122
      %s126 = sphi 0, %s125
      %s142 = sphi 0, %s126
      %s148 = sphi 0, %s150
      %s151 = sphi 0, %s148
      %s152 = sphi 0, %s151
      %s168 = sphi 0, %s152
    $region4: #{tpu_custom_call.1} parent=1 // loop_header_branch
      %21 = sbr.rel (%p19) target = $region8
    $region5: #{tpu_custom_call.1} parent=1 // loop_body
      %s23 = ssub.s32 %s18, 1
      %s24 = ssub.s32 %s18, 2
      %s25 = sadd.s32 %s18, 1
      %s26 = ssub.s32 %s18, %s25
      %p27 = scmp.eq.s32.totalorder %s26, 0
      %s29 = sadd.s32 %s28, 1
      %s30 = scalar_select %p27, %s28, %s29
      %p33 = pneg %p27
      %p34 = scmp.eq.s32.totalorder %s18, 1
      %p35 = por %p33, %p34
      %p36 = scmp.ne.s32.totalorder %s28, %s31
      %p37 = scmp.eq.s32.totalorder %s18, 0
      %p38 = por %p36, %p37
      %p39 = scmp.ne.s32.totalorder %s28, %s31
      %p40 = scmp.eq.s32.totalorder %s23, 1
      %p41 = por %p39, %p40
      %p42 = scmp.ne.s32.totalorder %s31, %s32
      %p43 = scmp.eq.s32.totalorder %s23, 0
      %p44 = por %p42, %p43
      %p45 = scmp.ne.s32.totalorder %s31, %s32
      %p46 = scmp.eq.s32.totalorder %s24, 1
      %p47 = por %p45, %p46
      %p49 = scmp.ne.s32.totalorder %s32, %s48
      %p50 = scmp.eq.s32.totalorder %s24, 0
      %p51 = por %p49, %p50
      %s53 = sadd.s32 %s52, 1
      %p56 = scmp.eq.s32.totalorder %s18, 1
      %p57 = scmp.ne.s32.totalorder %s52, %s54
      %p58 = scmp.eq.s32.totalorder %s18, 0
      %p59 = por %p57, %p58
      %p60 = scmp.ne.s32.totalorder %s52, %s54
      %p61 = scmp.eq.s32.totalorder %s23, 1
      %p62 = por %p60, %p61
      %p63 = scmp.ne.s32.totalorder %s54, %s55
      %p64 = scmp.eq.s32.totalorder %s23, 0
      %p65 = por %p63, %p64
      %p66 = scmp.ne.s32.totalorder %s54, %s55
      %p67 = scmp.eq.s32.totalorder %s24, 1
      %p68 = por %p66, %p67
      %p70 = scmp.ne.s32.totalorder %s55, %s69
      %p71 = scmp.eq.s32.totalorder %s24, 0
      %p72 = por %p70, %p71
      %s74 = sadd.s32 %s73, 1
      %p77 = scmp.eq.s32.totalorder %s18, 1
      %p78 = scmp.ne.s32.totalorder %s73, %s75
      %p79 = scmp.eq.s32.totalorder %s18, 0
      %p80 = por %p78, %p79
      %p81 = scmp.ne.s32.totalorder %s73, %s75
      %p82 = scmp.eq.s32.totalorder %s23, 1
      %p83 = por %p81, %p82
      %p84 = scmp.ne.s32.totalorder %s75, %s76
      %p85 = scmp.eq.s32.totalorder %s23, 0
      %p86 = por %p84, %p85
      %p87 = scmp.ne.s32.totalorder %s75, %s76
      %p88 = scmp.eq.s32.totalorder %s24, 1
      %p89 = por %p87, %p88
      %p91 = scmp.ne.s32.totalorder %s76, %s90
      %p92 = scmp.eq.s32.totalorder %s24, 0
      %p93 = por %p91, %p92
      %s94 = ssub.s32 %s18, %s25
      %p95 = scmp.eq.s32.totalorder %s94, 0
      %s97 = sadd.s32 %s96, 1
      %s98 = scalar_select %p95, %s96, %s97
      %p101 = pneg %p95
      %p102 = scmp.eq.s32.totalorder %s18, 1
      %p103 = por %p101, %p102
      %p104 = scmp.ne.s32.totalorder %s96, %s99
      %p105 = scmp.eq.s32.totalorder %s18, 0
      %p106 = por %p104, %p105
      %p107 = scmp.ne.s32.totalorder %s96, %s99
      %p108 = scmp.eq.s32.totalorder %s23, 1
      %p109 = por %p107, %p108
      %p110 = scmp.ne.s32.totalorder %s99, %s100
      %p111 = scmp.eq.s32.totalorder %s23, 0
      %p112 = por %p110, %p111
      %p113 = scmp.ne.s32.totalorder %s99, %s100
      %p114 = scmp.eq.s32.totalorder %s24, 1
      %p115 = por %p113, %p114
      %p117 = scmp.ne.s32.totalorder %s100, %s116
      %p118 = scmp.eq.s32.totalorder %s24, 0
      %p119 = por %p117, %p118
      %s120 = ssub.s32 %s18, %s25
      %p121 = scmp.eq.s32.totalorder %s120, 0
      %s123 = sadd.s32 %s122, 1
      %s124 = scalar_select %p121, %s122, %s123
      %p127 = pneg %p121
      %p128 = scmp.eq.s32.totalorder %s18, 1
      %p129 = por %p127, %p128
      %p130 = scmp.ne.s32.totalorder %s122, %s125
      %p131 = scmp.eq.s32.totalorder %s18, 0
      %p132 = por %p130, %p131
      %p133 = scmp.ne.s32.totalorder %s122, %s125
      %p134 = scmp.eq.s32.totalorder %s23, 1
      %p135 = por %p133, %p134
      %p136 = scmp.ne.s32.totalorder %s125, %s126
      %p137 = scmp.eq.s32.totalorder %s23, 0
      %p138 = por %p136, %p137
      %p139 = scmp.ne.s32.totalorder %s125, %s126
      %p140 = scmp.eq.s32.totalorder %s24, 1
      %p141 = por %p139, %p140
      %p143 = scmp.ne.s32.totalorder %s126, %s142
      %p144 = scmp.eq.s32.totalorder %s24, 0
      %p145 = por %p143, %p144
      %s146 = ssub.s32 %s18, %s25
      %p147 = scmp.eq.s32.totalorder %s146, 0
      %s149 = sadd.s32 %s148, 1
      %s150 = scalar_select %p147, %s148, %s149
      %p153 = pneg %p147
      %p154 = scmp.eq.s32.totalorder %s18, 1
      %p155 = por %p153, %p154
      %p156 = scmp.ne.s32.totalorder %s148, %s151
      %p157 = scmp.eq.s32.totalorder %s18, 0
      %p158 = por %p156, %p157
      %p159 = scmp.ne.s32.totalorder %s148, %s151
      %p160 = scmp.eq.s32.totalorder %s23, 1
      %p161 = por %p159, %p160
      %p162 = scmp.ne.s32.totalorder %s151, %s152
      %p163 = scmp.eq.s32.totalorder %s23, 0
      %p164 = por %p162, %p163
      %p165 = scmp.ne.s32.totalorder %s151, %s152
      %p166 = scmp.eq.s32.totalorder %s24, 1
      %p167 = por %p165, %p166
      %p169 = scmp.ne.s32.totalorder %s152, %s168
      %p170 = scmp.eq.s32.totalorder %s24, 0
      %p171 = por %p169, %p170
      %p172 = scmp.le.s32.totalorder 1, %s18
      %p173 = scmp.lt.s32.totalorder %s18, 3
      %p174 = pnand %p172, %p173
      %p175 = pneg %p174
      // Predicated region
      $region9: #{tpu_custom_call.1} parent=5 // pred_check
        _
      $region10: #{tpu_custom_call.1} parent=5 // pred_check_branch
        %177 = sbr.rel (%p174) target = $region12
      $region11: #{tpu_custom_call.1} parent=5 // pred_region
        %s178 = ssub.s32 %s18, 1
        // Predicated region
        $region13: #{tpu_custom_call.1} parent=11 // pred_check
          %p179 = pneg %p65
        $region14: #{tpu_custom_call.1} parent=11 // pred_check_branch
          %181 = sbr.rel (%p179) target = $region16
        $region15: #{tpu_custom_call.1} parent=11 // pred_region
          _
        $region16: #{tpu_custom_call.1} parent=11 // pred_fallthru
          _
        // Predicated region
        $region17: #{tpu_custom_call.1} parent=11 // pred_check
          %p182 = pneg %p86
        $region18: #{tpu_custom_call.1} parent=11 // pred_check_branch
          %184 = sbr.rel (%p182) target = $region20
        $region19: #{tpu_custom_call.1} parent=11 // pred_region
          _
        $region20: #{tpu_custom_call.1} parent=11 // pred_fallthru
          _
      $region12: #{tpu_custom_call.1} parent=5 // pred_fallthru
        _
      %p185 = scmp.lt.s32.totalorder %s18, 2
      // Predicated region
      $region21: #{tpu_custom_call.1} parent=5 // pred_check
        %p186 = pneg %p185
      $region22: #{tpu_custom_call.1} parent=5 // pred_check_branch
        %188 = sbr.rel (%p186) target = $region24
      $region23: #{tpu_custom_call.1} parent=5 // pred_region
        // Predicated region
        $region25: #{tpu_custom_call.1} parent=23 // pred_check
          %p189 = pneg %p38
        $region26: #{tpu_custom_call.1} parent=23 // pred_check_branch
          %191 = sbr.rel (%p189) target = $region28
        $region27: #{tpu_custom_call.1} parent=23 // pred_region
          %s192 = smul.u32 6, %s18
          %p193 = scmp.lt.s32.totalorder %s192, 11
          %s194 = scalar_select %p193, %s192, 11
          %s195 = smul.addr %s194, 4
          %s196 = smul.addr %s195, 8
          %s197 = scalar_lea.vmem %s0, %s196
          %s198 = smul.u32 6, %s18
        $region28: #{tpu_custom_call.1} parent=23 // pred_fallthru
          _
      $region24: #{tpu_custom_call.1} parent=5 // pred_fallthru
        _
      %p199 = scmp.le.s32.totalorder 1, %s18
      %p200 = scmp.lt.s32.totalorder %s18, 3
      %p201 = pnand %p199, %p200
      %p202 = pneg %p201
      // Predicated region
      $region29: #{tpu_custom_call.1} parent=5 // pred_check
        _
      $region30: #{tpu_custom_call.1} parent=5 // pred_check_branch
        %204 = sbr.rel (%p201) target = $region32
      $region31: #{tpu_custom_call.1} parent=5 // pred_region
        %s205 = ssub.s32 %s18, 1
        %s206 = smul.u32 6, %s23
        %p207 = scmp.lt.s32.totalorder %s206, 11
        %s208 = scalar_select %p207, %s206, 11
        %s209 = smul.addr %s208, 4
        %s210 = smul.addr %s209, 8
        %s211 = scalar_lea.vmem %s0, %s210
        %p212 = pneg %p44
        %p213 = pneg %p41
        %p214 = pneg %p65
        %p215 = pneg %p62
        %p216 = pneg %p86
        %p217 = pneg %p83
        %p218 = pneg %p112
        %p219 = pneg %p109
        %s220 = smul.u32 6, %s23
        %p221 = scmp.lt.s32.totalorder %s220, 11
        %s222 = scalar_select %p221, %s220, 11
        %s223 = smul.addr %s222, 8
        %s224 = scalar_lea.vmem %s3, %s223
        %p225 = pneg %p138
        %p226 = pneg %p135
        %s227 = sand.u32 %s125, 1
        %s228 = scalar_lea.sflag [#allocation3], %s227
        %s229 = sand.u32 %s125, 1
        %s230 = smul.addr %s229, 48
        %s231 = scalar_lea.vmem [#allocation2], %s230
        %p232 = pneg %p164
        %p233 = pneg %p161
        %s234 = sand.u32 %s151, 1
        %s235 = scalar_lea.sflag [#allocation5], %s234
        %s236 = sand.u32 %s151, 1
        %s237 = smul.addr %s236, 48
        %s238 = scalar_lea.vmem [#allocation4], %s237
        %s239 = smul.u32 6, %s23
        %p240 = scmp.lt.s32.totalorder %s239, 11
        %s241 = scalar_select %p240, %s239, 11
        %s242 = smul.addr %s241, 4
        %s243 = smul.addr %s242, 8
        %s244 = scalar_lea.vmem %s0, %s243
        %s245 = smul.u32 6, %s23
        %s246 = smul.u32 6, %s23
        %p247 = scmp.lt.s32.totalorder %s246, 11
        %s248 = scalar_select %p247, %s246, 11
        %s249 = smul.addr %s248, 8
        %s250 = scalar_lea.vmem %s3, %s249
        %s251 = smul.u32 6, %s23
        %s252 = smul.u32 6, %s23
        %s253 = smul.u32 6, %s23
        %v254 = vld [vmem:[%s1] sm:$0xff]
        %v255 = vld [vmem:[%s1 + $0x8] sm:$0xff]
        %v256 = vld [vmem:[%s2] sm:$0xff]
        %v257 = vld [vmem:[%s2 + $0x8] sm:$0xff]
        %259 = vset.pattern.permute.xlu0 0
        %260 = vperm.xlu0 %259, %v256
        %v261 = vpop.permute.xlu0 %260
        %264 = vset.pattern.permute.xlu0 0
        %265 = vperm.xlu0 %264, %v257
        %v266 = vpop.permute.xlu0 %265
        %v268 = vld [vmem:[%s244] sm:$0xff]
        %v269 = vld [vmem:[%s244 + $0x8] sm:$0xff]
        %v270 = vld [vmem:[%s244 + $0x10] sm:$0xff]
        %v271 = vld [vmem:[%s244 + $0x18] sm:$0xff]
        %vm272 = vcmask 261120
        %v274 = vsel %vm272, %v254, 0
        %v277 = vsel %vm272, %v255, 0
        %279 = vmatprep.subr.mxu0 0.0
        %280 = vmatpush1.msra.mxu0 %v268
        %281 = vmatprep.subr.mxu0 0.0
        %282 = vmatpush1.msra.mxu0 %v269
        %283 = vmatprep.subr.mxu0 0.0
        %284 = vmatpush1.msra.mxu0 %v270
        %285 = vmatprep.subr.mxu0 0.0
        %286 = vmatpush1.msra.mxu0 %v271
        %287 = vmatprep.subr.mxu0 0.0
        %288 = vmatpush1.msra.mxu0 0.0
        %289 = vmatprep.subr.mxu0 0.0
        %290 = vmatpush1.msra.mxu0 0.0
        %291 = vmatprep.subr.mxu0 0.0
        %292 = vmatpush1.msra.mxu0 0.0
        %293 = vmatprep.subr.mxu0 0.0
        %294 = vmatpush1.msra.mxu0 0.0
        %295 = vmatprep.subr.mxu0 0.0
        %296 = vmatpush1.msra.mxu0 0.0
        %297 = vmatprep.subr.mxu0 0.0
        %298 = vmatpush1.msra.mxu0 0.0
        %299 = vmatprep.subr.mxu0 0.0
        %300 = vmatpush1.msra.mxu0 0.0
        %301 = vmatprep.subr.mxu0 0.0
        %302 = vmatpush1.msra.mxu0 0.0
        %303 = vmatprep.subr.mxu0 0.0
        %304 = vmatpush1.msra.mxu0 0.0
        %305 = vmatprep.subr.mxu0 0.0
        %306 = vmatpush1.msra.mxu0 0.0
        %307 = vmatprep.subr.mxu0 0.0
        %308 = vmatpush1.msra.mxu0 0.0
        %309 = vmatprep.subr.mxu0 0.0
        %310 = vmatpush1.msra.mxu0 0.0
        %311 = vmatprep.subr.mxu0 0.0
        %312 = vmatpush1.msra.mxu0 0.0
        %313 = vmatprep.subr.mxu0 0.0
        %314 = vmatpush1.msra.mxu0 0.0
        %315 = vmatprep.subr.mxu0 0.0
        %316 = vmatpush1.msra.mxu0 0.0
        %317 = vmatprep.subr.mxu0 0.0
        %318 = vmatpush1.msra.mxu0 0.0
        %319 = vmatprep.subr.mxu0 0.0
        %320 = vmatpush1.msra.mxu0 0.0
        %321 = vmatprep.subr.mxu0 0.0
        %322 = vmatpush1.msra.mxu0 0.0
        %323 = vmatprep.subr.mxu0 0.0
        %324 = vmatpush1.msra.mxu0 0.0
        %325 = vmatprep.subr.mxu0 0.0
        %326 = vmatpush1.msra.mxu0 0.0
        %327 = vmatprep.subr.mxu0 0.0
        %328 = vmatpush1.msra.mxu0 0.0
        %329 = vmatprep.subr.mxu0 0.0
        %330 = vmatpush1.msra.mxu0 0.0
        %331 = vmatprep.subr.mxu0 0.0
        %332 = vmatpush1.msra.mxu0 0.0
        %333 = vmatprep.subr.mxu0 0.0
        %334 = vmatpush1.msra.mxu0 0.0
        %335 = vmatprep.subr.mxu0 0.0
        %336 = vmatpush1.msra.mxu0 0.0
        %337 = vmatprep.subr.mxu0 0.0
        %338 = vmatpush1.msra.mxu0 0.0
        %339 = vmatprep.subr.mxu0 0.0
        %340 = vmatpush1.msra.mxu0 0.0
        %341 = vmatprep.subr.mxu0 0.0
        %342 = vmatpush1.msra.mxu0 0.0
        %343 = vmatprep.mubr.f32.mxu0 0.0
        %344 = vmatmul.mubr.f32.gmra.mrb[0].mxu0 %v274
        %v345 = vpop.f32.mrb[0].mxu0
        %v346 = vadd.f32 %v261, %v345
        %v347 = vpop.f32.mrb[0].mxu0
        %348 = vmatprep.mubr.f32.mxu0 0.0
        %349 = vmatmul.mubr.f32.gmra.mrb[0].mxu0 %v277
        %v350 = vpop.f32.mrb[0].mxu0
        %v351 = vadd.f32 %v266, %v350
        %v352 = vpop.f32.mrb[0].mxu0
        %353 = vdwg.mxu0
        %v354 = vtanh.pop %v346
        %v355 = vxor.u32 %v351, 2147483648
        %v356 = vmul.f32 %v355, 1.442695
        %v357 = vpow.pop %v356
        %v358 = vadd.f32 %v357, 1.0
        %v359 = vrcp.pop %v358
        %v360 = vmul.f32 1.0, %v359
        %v361 = vmul.f32 %v354, 1.442695
        %v362 = vpow.pop %v361
        %vm363 = vcmask 130048
        %v364 = vsel %vm363, %v362, 0.0
        %365 = vadd.xlane.f32.xlu0 %v364
        %v366 = vpop.xlane.xlu0 %365
        %v367 = vrcp.pop %v366
        %v368 = vmul.f32 %v366, %v367
        %v369 = vsub.f32 2.0, %v368
        %v370 = vmul.f32 %v367, %v369
        %v371 = vmul.f32 %v362, %v370
        %372 = vst.msk [vmem:[%s231] sm:$0xff] %vm363, %v371
        %373 = vst.msk [vmem:[%s238] sm:$0xff] %vm363, %v360
        %v374 = vmul.f32 %v362, %v360
        %v375 = vsel %vm363, %v374, 0.0
        %376 = vadd.xlane.f32.xlu0 %v375
        %v377 = vpop.xlane.xlu0 %376
        %v378 = vmul.f32 %v377, %v370
        %vm379 = vcmask 7168
        %380 = vst.msk [vmem:[%s250] sm:$0xff] %vm379, %v378
        %s381 = scalar_lea.vmem %s244, 32
        %v382 = vld [vmem:[%s381] sm:$0xff]
        %v383 = vld [vmem:[%s381 + $0x8] sm:$0xff]
        %v384 = vld [vmem:[%s381 + $0x10] sm:$0xff]
        %v385 = vld [vmem:[%s381 + $0x18] sm:$0xff]
        %386 = vmatprep.subr.mxu0 0.0
        %387 = vmatpush1.msra.mxu0 %v382
        %388 = vmatprep.subr.mxu0 0.0
        %389 = vmatpush1.msra.mxu0 %v383
        %390 = vmatprep.subr.mxu0 0.0
        %391 = vmatpush1.msra.mxu0 %v384
        %392 = vmatprep.subr.mxu0 0.0
        %393 = vmatpush1.msra.mxu0 %v385
        %394 = vmatprep.subr.mxu0 0.0
        %395 = vmatpush1.msra.mxu0 0.0
        %396 = vmatprep.subr.mxu0 0.0
        %397 = vmatpush1.msra.mxu0 0.0
        %398 = vmatprep.subr.mxu0 0.0
        %399 = vmatpush1.msra.mxu0 0.0
        %400 = vmatprep.subr.mxu0 0.0
        %401 = vmatpush1.msra.mxu0 0.0
        %402 = vmatprep.subr.mxu0 0.0
        %403 = vmatpush1.msra.mxu0 0.0
        %404 = vmatprep.subr.mxu0 0.0
        %405 = vmatpush1.msra.mxu0 0.0
        %406 = vmatprep.subr.mxu0 0.0
        %407 = vmatpush1.msra.mxu0 0.0
        %408 = vmatprep.subr.mxu0 0.0
        %409 = vmatpush1.msra.mxu0 0.0
        %410 = vmatprep.subr.mxu0 0.0
        %411 = vmatpush1.msra.mxu0 0.0
        %412 = vmatprep.subr.mxu0 0.0
        %413 = vmatpush1.msra.mxu0 0.0
        %414 = vmatprep.subr.mxu0 0.0
        %415 = vmatpush1.msra.mxu0 0.0
        %416 = vmatprep.subr.mxu0 0.0
        %417 = vmatpush1.msra.mxu0 0.0
        %418 = vmatprep.subr.mxu0 0.0
        %419 = vmatpush1.msra.mxu0 0.0
        %420 = vmatprep.subr.mxu0 0.0
        %421 = vmatpush1.msra.mxu0 0.0
        %422 = vmatprep.subr.mxu0 0.0
        %423 = vmatpush1.msra.mxu0 0.0
        %424 = vmatprep.subr.mxu0 0.0
        %425 = vmatpush1.msra.mxu0 0.0
        %426 = vmatprep.subr.mxu0 0.0
        %427 = vmatpush1.msra.mxu0 0.0
        %428 = vmatprep.subr.mxu0 0.0
        %429 = vmatpush1.msra.mxu0 0.0
        %430 = vmatprep.subr.mxu0 0.0
        %431 = vmatpush1.msra.mxu0 0.0
        %432 = vmatprep.subr.mxu0 0.0
        %433 = vmatpush1.msra.mxu0 0.0
        %434 = vmatprep.subr.mxu0 0.0
        %435 = vmatpush1.msra.mxu0 0.0
        %436 = vmatprep.subr.mxu0 0.0
        %437 = vmatpush1.msra.mxu0 0.0
        %438 = vmatprep.subr.mxu0 0.0
        %439 = vmatpush1.msra.mxu0 0.0
        %440 = vmatprep.subr.mxu0 0.0
        %441 = vmatpush1.msra.mxu0 0.0
        %442 = vmatprep.subr.mxu0 0.0
        %443 = vmatpush1.msra.mxu0 0.0
        %444 = vmatprep.subr.mxu0 0.0
        %445 = vmatpush1.msra.mxu0 0.0
        %446 = vmatprep.subr.mxu0 0.0
        %447 = vmatpush1.msra.mxu0 0.0
        %448 = vmatprep.subr.mxu0 0.0
        %449 = vmatpush1.msra.mxu0 0.0
        %450 = vmatprep.mubr.f32.mxu0 0.0
        %451 = vmatmul.mubr.f32.gmra.mrb[0].mxu0 %v274
        %v452 = vpop.f32.mrb[0].mxu0
        %v453 = vadd.f32 %v261, %v452
        %v454 = vpop.f32.mrb[0].mxu0
        %455 = vmatprep.mubr.f32.mxu0 0.0
        %456 = vmatmul.mubr.f32.gmra.mrb[0].mxu0 %v277
        %v457 = vpop.f32.mrb[0].mxu0
        %v458 = vadd.f32 %v266, %v457
        %v459 = vpop.f32.mrb[0].mxu0
        %460 = vdwg.mxu0
        %v461 = vtanh.pop %v453
        %v462 = vxor.u32 %v458, 2147483648
        %v463 = vmul.f32 %v462, 1.442695
        %v464 = vpow.pop %v463
        %v465 = vadd.f32 %v464, 1.0
        %v466 = vrcp.pop %v465
        %v467 = vmul.f32 1.0, %v466
        %v468 = vmul.f32 %v461, 1.442695
        %v469 = vpow.pop %v468
        %v470 = vsel %vm363, %v469, 0.0
        %471 = vadd.xlane.f32.xlu0 %v470
        %v472 = vpop.xlane.xlu0 %471
        %v473 = vrcp.pop %v472
        %v474 = vmul.f32 %v472, %v473
        %v475 = vsub.f32 2.0, %v474
        %v476 = vmul.f32 %v473, %v475
        %v477 = vmul.f32 %v469, %v476
        %s478 = scalar_lea.vmem %s231, 8 [#allocation2]
        %479 = vst.msk [vmem:[%s478] sm:$0xff] %vm363, %v477
        %s480 = scalar_lea.vmem %s238, 8 [#allocation4]
        %481 = vst.msk [vmem:[%s480] sm:$0xff] %vm363, %v467
        %v482 = vmul.f32 %v469, %v467
        %v483 = vsel %vm363, %v482, 0.0
        %484 = vadd.xlane.f32.xlu0 %v483
        %v485 = vpop.xlane.xlu0 %484
        %v486 = vmul.f32 %v485, %v476
        %s487 = scalar_lea.vmem %s250, 8
        %488 = vst.msk [vmem:[%s487] sm:$0xff] %vm379, %v486
        %s489 = scalar_lea.vmem %s244, 64
        %v490 = vld [vmem:[%s489] sm:$0xff]
        %v491 = vld [vmem:[%s489 + $0x8] sm:$0xff]
        %v492 = vld [vmem:[%s489 + $0x10] sm:$0xff]
        %v493 = vld [vmem:[%s489 + $0x18] sm:$0xff]
        %494 = vmatprep.subr.mxu0 0.0
        %495 = vmatpush1.msra.mxu0 %v490
        %496 = vmatprep.subr.mxu0 0.0
        %497 = vmatpush1.msra.mxu0 %v491
        %498 = vmatprep.subr.mxu0 0.0
        %499 = vmatpush1.msra.mxu0 %v492
        %500 = vmatprep.subr.mxu0 0.0
        %501 = vmatpush1.msra.mxu0 %v493
        %502 = vmatprep.subr.mxu0 0.0
        %503 = vmatpush1.msra.mxu0 0.0
        %504 = vmatprep.subr.mxu0 0.0
        %505 = vmatpush1.msra.mxu0 0.0
        %506 = vmatprep.subr.mxu0 0.0
        %507 = vmatpush1.msra.mxu0 0.0
        %508 = vmatprep.subr.mxu0 0.0
        %509 = vmatpush1.msra.mxu0 0.0
        %510 = vmatprep.subr.mxu0 0.0
        %511 = vmatpush1.msra.mxu0 0.0
        %512 = vmatprep.subr.mxu0 0.0
        %513 = vmatpush1.msra.mxu0 0.0
        %514 = vmatprep.subr.mxu0 0.0
        %515 = vmatpush1.msra.mxu0 0.0
        %516 = vmatprep.subr.mxu0 0.0
        %517 = vmatpush1.msra.mxu0 0.0
        %518 = vmatprep.subr.mxu0 0.0
        %519 = vmatpush1.msra.mxu0 0.0
        %520 = vmatprep.subr.mxu0 0.0
        %521 = vmatpush1.msra.mxu0 0.0
        %522 = vmatprep.subr.mxu0 0.0
        %523 = vmatpush1.msra.mxu0 0.0
        %524 = vmatprep.subr.mxu0 0.0
        %525 = vmatpush1.msra.mxu0 0.0
        %526 = vmatprep.subr.mxu0 0.0
        %527 = vmatpush1.msra.mxu0 0.0
        %528 = vmatprep.subr.mxu0 0.0
        %529 = vmatpush1.msra.mxu0 0.0
        %530 = vmatprep.subr.mxu0 0.0
        %531 = vmatpush1.msra.mxu0 0.0
        %532 = vmatprep.subr.mxu0 0.0
        %533 = vmatpush1.msra.mxu0 0.0
        %534 = vmatprep.subr.mxu0 0.0
        %535 = vmatpush1.msra.mxu0 0.0
        %536 = vmatprep.subr.mxu0 0.0
        %537 = vmatpush1.msra.mxu0 0.0
        %538 = vmatprep.subr.mxu0 0.0
        %539 = vmatpush1.msra.mxu0 0.0
        %540 = vmatprep.subr.mxu0 0.0
        %541 = vmatpush1.msra.mxu0 0.0
        %542 = vmatprep.subr.mxu0 0.0
        %543 = vmatpush1.msra.mxu0 0.0
        %544 = vmatprep.subr.mxu0 0.0
        %545 = vmatpush1.msra.mxu0 0.0
        %546 = vmatprep.subr.mxu0 0.0
        %547 = vmatpush1.msra.mxu0 0.0
        %548 = vmatprep.subr.mxu0 0.0
        %549 = vmatpush1.msra.mxu0 0.0
        %550 = vmatprep.subr.mxu0 0.0
        %551 = vmatpush1.msra.mxu0 0.0
        %552 = vmatprep.subr.mxu0 0.0
        %553 = vmatpush1.msra.mxu0 0.0
        %554 = vmatprep.subr.mxu0 0.0
        %555 = vmatpush1.msra.mxu0 0.0
        %556 = vmatprep.subr.mxu0 0.0
        %557 = vmatpush1.msra.mxu0 0.0
        %558 = vmatprep.mubr.f32.mxu0 0.0
        %559 = vmatmul.mubr.f32.gmra.mrb[0].mxu0 %v274
        %v560 = vpop.f32.mrb[0].mxu0
        %v561 = vadd.f32 %v261, %v560
        %v562 = vpop.f32.mrb[0].mxu0
        %563 = vmatprep.mubr.f32.mxu0 0.0
        %564 = vmatmul.mubr.f32.gmra.mrb[0].mxu0 %v277
        %v565 = vpop.f32.mrb[0].mxu0
        %v566 = vadd.f32 %v266, %v565
        %v567 = vpop.f32.mrb[0].mxu0
        %568 = vdwg.mxu0
        %v569 = vtanh.pop %v561
        %v570 = vxor.u32 %v566, 2147483648
        %v571 = vmul.f32 %v570, 1.442695
        %v572 = vpow.pop %v571
        %v573 = vadd.f32 %v572, 1.0
        %v574 = vrcp.pop %v573
        %v575 = vmul.f32 1.0, %v574
        %v576 = vmul.f32 %v569, 1.442695
        %v577 = vpow.pop %v576
        %v578 = vsel %vm363, %v577, 0.0
        %579 = vadd.xlane.f32.xlu0 %v578
        %v580 = vpop.xlane.xlu0 %579
        %v581 = vrcp.pop %v580
        %v582 = vmul.f32 %v580, %v581
        %v583 = vsub.f32 2.0, %v582
        %v584 = vmul.f32 %v581, %v583
        %v585 = vmul.f32 %v577, %v584
        %s586 = scalar_lea.vmem %s231, 16 [#allocation2]
        %587 = vst.msk [vmem:[%s586] sm:$0xff] %vm363, %v585
        %s588 = scalar_lea.vmem %s238, 16 [#allocation4]
        %589 = vst.msk [vmem:[%s588] sm:$0xff] %vm363, %v575
        %v590 = vmul.f32 %v577, %v575
        %v591 = vsel %vm363, %v590, 0.0
        %592 = vadd.xlane.f32.xlu0 %v591
        %v593 = vpop.xlane.xlu0 %592
        %v594 = vmul.f32 %v593, %v584
        %s595 = scalar_lea.vmem %s250, 16
        %596 = vst.msk [vmem:[%s595] sm:$0xff] %vm379, %v594
        %s597 = scalar_lea.vmem %s244, 96
        %v598 = vld [vmem:[%s597] sm:$0xff]
        %v599 = vld [vmem:[%s597 + $0x8] sm:$0xff]
        %v600 = vld [vmem:[%s597 + $0x10] sm:$0xff]
        %v601 = vld [vmem:[%s597 + $0x18] sm:$0xff]
        %602 = vmatprep.subr.mxu0 0.0
        %603 = vmatpush1.msra.mxu0 %v598
        %604 = vmatprep.subr.mxu0 0.0
        %605 = vmatpush1.msra.mxu0 %v599
        %606 = vmatprep.subr.mxu0 0.0
        %607 = vmatpush1.msra.mxu0 %v600
        %608 = vmatprep.subr.mxu0 0.0
        %609 = vmatpush1.msra.mxu0 %v601
        %610 = vmatprep.subr.mxu0 0.0
        %611 = vmatpush1.msra.mxu0 0.0
        %612 = vmatprep.subr.mxu0 0.0
        %613 = vmatpush1.msra.mxu0 0.0
        %614 = vmatprep.subr.mxu0 0.0
        %615 = vmatpush1.msra.mxu0 0.0
        %616 = vmatprep.subr.mxu0 0.0
        %617 = vmatpush1.msra.mxu0 0.0
        %618 = vmatprep.subr.mxu0 0.0
        %619 = vmatpush1.msra.mxu0 0.0
        %620 = vmatprep.subr.mxu0 0.0
        %621 = vmatpush1.msra.mxu0 0.0
        %622 = vmatprep.subr.mxu0 0.0
        %623 = vmatpush1.msra.mxu0 0.0
        %624 = vmatprep.subr.mxu0 0.0
        %625 = vmatpush1.msra.mxu0 0.0
        %626 = vmatprep.subr.mxu0 0.0
        %627 = vmatpush1.msra.mxu0 0.0
        %628 = vmatprep.subr.mxu0 0.0
        %629 = vmatpush1.msra.mxu0 0.0
        %630 = vmatprep.subr.mxu0 0.0
        %631 = vmatpush1.msra.mxu0 0.0
        %632 = vmatprep.subr.mxu0 0.0
        %633 = vmatpush1.msra.mxu0 0.0
        %634 = vmatprep.subr.mxu0 0.0
        %635 = vmatpush1.msra.mxu0 0.0
        %636 = vmatprep.subr.mxu0 0.0
        %637 = vmatpush1.msra.mxu0 0.0
        %638 = vmatprep.subr.mxu0 0.0
        %639 = vmatpush1.msra.mxu0 0.0
        %640 = vmatprep.subr.mxu0 0.0
        %641 = vmatpush1.msra.mxu0 0.0
        %642 = vmatprep.subr.mxu0 0.0
        %643 = vmatpush1.msra.mxu0 0.0
        %644 = vmatprep.subr.mxu0 0.0
        %645 = vmatpush1.msra.mxu0 0.0
        %646 = vmatprep.subr.mxu0 0.0
        %647 = vmatpush1.msra.mxu0 0.0
        %648 = vmatprep.subr.mxu0 0.0
        %649 = vmatpush1.msra.mxu0 0.0
        %650 = vmatprep.subr.mxu0 0.0
        %651 = vmatpush1.msra.mxu0 0.0
        %652 = vmatprep.subr.mxu0 0.0
        %653 = vmatpush1.msra.mxu0 0.0
        %654 = vmatprep.subr.mxu0 0.0
        %655 = vmatpush1.msra.mxu0 0.0
        %656 = vmatprep.subr.mxu0 0.0
        %657 = vmatpush1.msra.mxu0 0.0
        %658 = vmatprep.subr.mxu0 0.0
        %659 = vmatpush1.msra.mxu0 0.0
        %660 = vmatprep.subr.mxu0 0.0
        %661 = vmatpush1.msra.mxu0 0.0
        %662 = vmatprep.subr.mxu0 0.0
        %663 = vmatpush1.msra.mxu0 0.0
        %664 = vmatprep.subr.mxu0 0.0
        %665 = vmatpush1.msra.mxu0 0.0
        %666 = vmatprep.mubr.f32.mxu0 0.0
        %667 = vmatmul.mubr.f32.gmra.mrb[0].mxu0 %v274
        %v668 = vpop.f32.mrb[0].mxu0
        %v669 = vadd.f32 %v261, %v668
        %v670 = vpop.f32.mrb[0].mxu0
        %671 = vmatprep.mubr.f32.mxu0 0.0
        %672 = vmatmul.mubr.f32.gmra.mrb[0].mxu0 %v277
        %v673 = vpop.f32.mrb[0].mxu0
        %v674 = vadd.f32 %v266, %v673
        %v675 = vpop.f32.mrb[0].mxu0
        %676 = vdwg.mxu0
        %v677 = vtanh.pop %v669
        %v678 = vxor.u32 %v674, 2147483648
        %v679 = vmul.f32 %v678, 1.442695
        %v680 = vpow.pop %v679
        %v681 = vadd.f32 %v680, 1.0
        %v682 = vrcp.pop %v681
        %v683 = vmul.f32 1.0, %v682
        %v684 = vmul.f32 %v677, 1.442695
        %v685 = vpow.pop %v684
        %v686 = vsel %vm363, %v685, 0.0
        %687 = vadd.xlane.f32.xlu0 %v686
        %v688 = vpop.xlane.xlu0 %687
        %v689 = vrcp.pop %v688
        %v690 = vmul.f32 %v688, %v689
        %v691 = vsub.f32 2.0, %v690
        %v692 = vmul.f32 %v689, %v691
        %v693 = vmul.f32 %v685, %v692
        %s694 = scalar_lea.vmem %s231, 24 [#allocation2]
        %695 = vst.msk [vmem:[%s694] sm:$0xff] %vm363, %v693
        %s696 = scalar_lea.vmem %s238, 24 [#allocation4]
        %697 = vst.msk [vmem:[%s696] sm:$0xff] %vm363, %v683
        %v698 = vmul.f32 %v685, %v683
        %v699 = vsel %vm363, %v698, 0.0
        %700 = vadd.xlane.f32.xlu0 %v699
        %v701 = vpop.xlane.xlu0 %700
        %v702 = vmul.f32 %v701, %v692
        %s703 = scalar_lea.vmem %s250, 24
        %704 = vst.msk [vmem:[%s703] sm:$0xff] %vm379, %v702
        %s705 = scalar_lea.vmem %s244, 128
        %v706 = vld [vmem:[%s705] sm:$0xff]
        %v707 = vld [vmem:[%s705 + $0x8] sm:$0xff]
        %v708 = vld [vmem:[%s705 + $0x10] sm:$0xff]
        %v709 = vld [vmem:[%s705 + $0x18] sm:$0xff]
        %710 = vmatprep.subr.mxu0 0.0
        %711 = vmatpush1.msra.mxu0 %v706
        %712 = vmatprep.subr.mxu0 0.0
        %713 = vmatpush1.msra.mxu0 %v707
        %714 = vmatprep.subr.mxu0 0.0
        %715 = vmatpush1.msra.mxu0 %v708
        %716 = vmatprep.subr.mxu0 0.0
        %717 = vmatpush1.msra.mxu0 %v709
        %718 = vmatprep.subr.mxu0 0.0
        %719 = vmatpush1.msra.mxu0 0.0
        %720 = vmatprep.subr.mxu0 0.0
        %721 = vmatpush1.msra.mxu0 0.0
        %722 = vmatprep.subr.mxu0 0.0
        %723 = vmatpush1.msra.mxu0 0.0
        %724 = vmatprep.subr.mxu0 0.0
        %725 = vmatpush1.msra.mxu0 0.0
        %726 = vmatprep.subr.mxu0 0.0
        %727 = vmatpush1.msra.mxu0 0.0
        %728 = vmatprep.subr.mxu0 0.0
        %729 = vmatpush1.msra.mxu0 0.0
        %730 = vmatprep.subr.mxu0 0.0
        %731 = vmatpush1.msra.mxu0 0.0
        %732 = vmatprep.subr.mxu0 0.0
        %733 = vmatpush1.msra.mxu0 0.0
        %734 = vmatprep.subr.mxu0 0.0
        %735 = vmatpush1.msra.mxu0 0.0
        %736 = vmatprep.subr.mxu0 0.0
        %737 = vmatpush1.msra.mxu0 0.0
        %738 = vmatprep.subr.mxu0 0.0
        %739 = vmatpush1.msra.mxu0 0.0
        %740 = vmatprep.subr.mxu0 0.0
        %741 = vmatpush1.msra.mxu0 0.0
        %742 = vmatprep.subr.mxu0 0.0
        %743 = vmatpush1.msra.mxu0 0.0
        %744 = vmatprep.subr.mxu0 0.0
        %745 = vmatpush1.msra.mxu0 0.0
        %746 = vmatprep.subr.mxu0 0.0
        %747 = vmatpush1.msra.mxu0 0.0
        %748 = vmatprep.subr.mxu0 0.0
        %749 = vmatpush1.msra.mxu0 0.0
        %750 = vmatprep.subr.mxu0 0.0
        %751 = vmatpush1.msra.mxu0 0.0
        %752 = vmatprep.subr.mxu0 0.0
        %753 = vmatpush1.msra.mxu0 0.0
        %754 = vmatprep.subr.mxu0 0.0
        %755 = vmatpush1.msra.mxu0 0.0
        %756 = vmatprep.subr.mxu0 0.0
        %757 = vmatpush1.msra.mxu0 0.0
        %758 = vmatprep.subr.mxu0 0.0
        %759 = vmatpush1.msra.mxu0 0.0
        %760 = vmatprep.subr.mxu0 0.0
        %761 = vmatpush1.msra.mxu0 0.0
        %762 = vmatprep.subr.mxu0 0.0
        %763 = vmatpush1.msra.mxu0 0.0
        %764 = vmatprep.subr.mxu0 0.0
        %765 = vmatpush1.msra.mxu0 0.0
        %766 = vmatprep.subr.mxu0 0.0
        %767 = vmatpush1.msra.mxu0 0.0
        %768 = vmatprep.subr.mxu0 0.0
        %769 = vmatpush1.msra.mxu0 0.0
        %770 = vmatprep.subr.mxu0 0.0
        %771 = vmatpush1.msra.mxu0 0.0
        %772 = vmatprep.subr.mxu0 0.0
        %773 = vmatpush1.msra.mxu0 0.0
        %774 = vmatprep.mubr.f32.mxu0 0.0
        %775 = vmatmul.mubr.f32.gmra.mrb[0].mxu0 %v274
        %v776 = vpop.f32.mrb[0].mxu0
        %v777 = vadd.f32 %v261, %v776
        %v778 = vpop.f32.mrb[0].mxu0
        %779 = vmatprep.mubr.f32.mxu0 0.0
        %780 = vmatmul.mubr.f32.gmra.mrb[0].mxu0 %v277
        %v781 = vpop.f32.mrb[0].mxu0
        %v782 = vadd.f32 %v266, %v781
        %v783 = vpop.f32.mrb[0].mxu0
        %784 = vdwg.mxu0
        %v785 = vtanh.pop %v777
        %v786 = vxor.u32 %v782, 2147483648
        %v787 = vmul.f32 %v786, 1.442695
        %v788 = vpow.pop %v787
        %v789 = vadd.f32 %v788, 1.0
        %v790 = vrcp.pop %v789
        %v791 = vmul.f32 1.0, %v790
        %v792 = vmul.f32 %v785, 1.442695
        %v793 = vpow.pop %v792
        %v794 = vsel %vm363, %v793, 0.0
        %795 = vadd.xlane.f32.xlu0 %v794
        %v796 = vpop.xlane.xlu0 %795
        %v797 = vrcp.pop %v796
        %v798 = vmul.f32 %v796, %v797
        %v799 = vsub.f32 2.0, %v798
        %v800 = vmul.f32 %v797, %v799
        %v801 = vmul.f32 %v793, %v800
        %s802 = scalar_lea.vmem %s231, 32 [#allocation2]
        %803 = vst.msk [vmem:[%s802] sm:$0xff] %vm363, %v801
        %s804 = scalar_lea.vmem %s238, 32 [#allocation4]
        %805 = vst.msk [vmem:[%s804] sm:$0xff] %vm363, %v791
        %v806 = vmul.f32 %v793, %v791
        %v807 = vsel %vm363, %v806, 0.0
        %808 = vadd.xlane.f32.xlu0 %v807
        %v809 = vpop.xlane.xlu0 %808
        %v810 = vmul.f32 %v809, %v800
        %s811 = scalar_lea.vmem %s250, 32
        %812 = vst.msk [vmem:[%s811] sm:$0xff] %vm379, %v810
        %s813 = scalar_lea.vmem %s244, 160
        %v814 = vld [vmem:[%s813] sm:$0xff]
        %v815 = vld [vmem:[%s813 + $0x8] sm:$0xff]
        %v816 = vld [vmem:[%s813 + $0x10] sm:$0xff]
        %v817 = vld [vmem:[%s813 + $0x18] sm:$0xff]
        %818 = vmatprep.subr.mxu0 0.0
        %819 = vmatpush1.msra.mxu0 %v814
        %820 = vmatprep.subr.mxu0 0.0
        %821 = vmatpush1.msra.mxu0 %v815
        %822 = vmatprep.subr.mxu0 0.0
        %823 = vmatpush1.msra.mxu0 %v816
        %824 = vmatprep.subr.mxu0 0.0
        %825 = vmatpush1.msra.mxu0 %v817
        %826 = vmatprep.subr.mxu0 0.0
        %827 = vmatpush1.msra.mxu0 0.0
        %828 = vmatprep.subr.mxu0 0.0
        %829 = vmatpush1.msra.mxu0 0.0
        %830 = vmatprep.subr.mxu0 0.0
        %831 = vmatpush1.msra.mxu0 0.0
        %832 = vmatprep.subr.mxu0 0.0
        %833 = vmatpush1.msra.mxu0 0.0
        %834 = vmatprep.subr.mxu0 0.0
        %835 = vmatpush1.msra.mxu0 0.0
        %836 = vmatprep.subr.mxu0 0.0
        %837 = vmatpush1.msra.mxu0 0.0
        %838 = vmatprep.subr.mxu0 0.0
        %839 = vmatpush1.msra.mxu0 0.0
        %840 = vmatprep.subr.mxu0 0.0
        %841 = vmatpush1.msra.mxu0 0.0
        %842 = vmatprep.subr.mxu0 0.0
        %843 = vmatpush1.msra.mxu0 0.0
        %844 = vmatprep.subr.mxu0 0.0
        %845 = vmatpush1.msra.mxu0 0.0
        %846 = vmatprep.subr.mxu0 0.0
        %847 = vmatpush1.msra.mxu0 0.0
        %848 = vmatprep.subr.mxu0 0.0
        %849 = vmatpush1.msra.mxu0 0.0
        %850 = vmatprep.subr.mxu0 0.0
        %851 = vmatpush1.msra.mxu0 0.0
        %852 = vmatprep.subr.mxu0 0.0
        %853 = vmatpush1.msra.mxu0 0.0
        %854 = vmatprep.subr.mxu0 0.0
        %855 = vmatpush1.msra.mxu0 0.0
        %856 = vmatprep.subr.mxu0 0.0
        %857 = vmatpush1.msra.mxu0 0.0
        %858 = vmatprep.subr.mxu0 0.0
        %859 = vmatpush1.msra.mxu0 0.0
        %860 = vmatprep.subr.mxu0 0.0
        %861 = vmatpush1.msra.mxu0 0.0
        %862 = vmatprep.subr.mxu0 0.0
        %863 = vmatpush1.msra.mxu0 0.0
        %864 = vmatprep.subr.mxu0 0.0
        %865 = vmatpush1.msra.mxu0 0.0
        %866 = vmatprep.subr.mxu0 0.0
        %867 = vmatpush1.msra.mxu0 0.0
        %868 = vmatprep.subr.mxu0 0.0
        %869 = vmatpush1.msra.mxu0 0.0
        %870 = vmatprep.subr.mxu0 0.0
        %871 = vmatpush1.msra.mxu0 0.0
        %872 = vmatprep.subr.mxu0 0.0
        %873 = vmatpush1.msra.mxu0 0.0
        %874 = vmatprep.subr.mxu0 0.0
        %875 = vmatpush1.msra.mxu0 0.0
        %876 = vmatprep.subr.mxu0 0.0
        %877 = vmatpush1.msra.mxu0 0.0
        %878 = vmatprep.subr.mxu0 0.0
        %879 = vmatpush1.msra.mxu0 0.0
        %880 = vmatprep.subr.mxu0 0.0
        %881 = vmatpush1.msra.mxu0 0.0
        %882 = vmatprep.mubr.f32.mxu0 0.0
        %883 = vmatmul.mubr.f32.gmra.mrb[0].mxu0 %v274
        %v884 = vpop.f32.mrb[0].mxu0
        %v885 = vadd.f32 %v261, %v884
        %v886 = vpop.f32.mrb[0].mxu0
        %887 = vmatprep.mubr.f32.mxu0 0.0
        %888 = vmatmul.mubr.f32.gmra.mrb[0].mxu0 %v277
        %v889 = vpop.f32.mrb[0].mxu0
        %v890 = vadd.f32 %v266, %v889
        %v891 = vpop.f32.mrb[0].mxu0
        %892 = vdwg.mxu0
        %v893 = vtanh.pop %v885
        %v894 = vxor.u32 %v890, 2147483648
        %v895 = vmul.f32 %v894, 1.442695
        %v896 = vpow.pop %v895
        %v897 = vadd.f32 %v896, 1.0
        %v898 = vrcp.pop %v897
        %v899 = vmul.f32 1.0, %v898
        %v900 = vmul.f32 %v893, 1.442695
        %v901 = vpow.pop %v900
        %v902 = vsel %vm363, %v901, 0.0
        %903 = vadd.xlane.f32.xlu0 %v902
        %v904 = vpop.xlane.xlu0 %903
        %v905 = vrcp.pop %v904
        %v906 = vmul.f32 %v904, %v905
        %v907 = vsub.f32 2.0, %v906
        %v908 = vmul.f32 %v905, %v907
        %v909 = vmul.f32 %v901, %v908
        %s910 = scalar_lea.vmem %s231, 40 [#allocation2]
        %911 = vst.msk [vmem:[%s910] sm:$0xff] %vm363, %v909
        %s912 = scalar_lea.vmem %s238, 40 [#allocation4]
        %913 = vst.msk [vmem:[%s912] sm:$0xff] %vm363, %v899
        %v914 = vmul.f32 %v901, %v899
        %v915 = vsel %vm363, %v914, 0.0
        %916 = vadd.xlane.f32.xlu0 %v915
        %v917 = vpop.xlane.xlu0 %916
        %v918 = vmul.f32 %v917, %v908
        %s919 = scalar_lea.vmem %s250, 40
        %920 = vst.msk [vmem:[%s919] sm:$0xff] %vm379, %v918
        %s921 = smul.u32 6, %s23
        %p922 = scmp.lt.s32.totalorder %s921, 11
        %s923 = scalar_select %p922, %s921, 11
        %s924 = smul.addr %s923, 8
        %s925 = scalar_lea.vmem %s3, %s924
        %s926 = sand.u32 %s125, 1
        %s927 = scalar_lea.sflag [#allocation3], %s926
        %s928 = sand.u32 %s125, 1
        %s929 = smul.addr %s928, 48
        %s930 = scalar_lea.vmem [#allocation2], %s929
        %s931 = sand.u32 %s151, 1
        %s932 = scalar_lea.sflag [#allocation5], %s931
        %s933 = sand.u32 %s151, 1
        %s934 = smul.addr %s933, 48
        %s935 = scalar_lea.vmem [#allocation4], %s934
        // Predicated region
        $region33: #{tpu_custom_call.1} parent=31 // pred_check
          %p936 = pneg %p109
        $region34: #{tpu_custom_call.1} parent=31 // pred_check_branch
          %938 = sbr.rel (%p936) target = $region36
        $region35: #{tpu_custom_call.1} parent=31 // pred_region
          %s939 = smul.u32 6, %s23
        $region36: #{tpu_custom_call.1} parent=31 // pred_fallthru
          _
        // Predicated region
        $region37: #{tpu_custom_call.1} parent=31 // pred_check
          %p940 = pneg %p135
        $region38: #{tpu_custom_call.1} parent=31 // pred_check_branch
          %942 = sbr.rel (%p940) target = $region40
        $region39: #{tpu_custom_call.1} parent=31 // pred_region
          %s943 = smul.u32 6, %s23
          %s945 = ssub.s32 768, 768
          %946 = vsyncadd %s927, %s945
          %s947 = smul.addr %s943, 128
          %s948 = scalar_lea.hbm %s4, %s947
          %s949 = sshll.u32 %s930, 4
          %s950 = int_to_ptr.vmem [resolvable:$true] %s949
          %955 = dma.vmem_to_hbm [thread:$0]  %s950, 768, %s948, %s927, 128, 128, 8
        $region40: #{tpu_custom_call.1} parent=31 // pred_fallthru
          _
        // Predicated region
        $region41: #{tpu_custom_call.1} parent=31 // pred_check
          %p956 = pneg %p161
        $region42: #{tpu_custom_call.1} parent=31 // pred_check_branch
          %958 = sbr.rel (%p956) target = $region44
        $region43: #{tpu_custom_call.1} parent=31 // pred_region
          %s959 = smul.u32 6, %s23
          %s961 = ssub.s32 768, 768
          %962 = vsyncadd %s932, %s961
          %s963 = smul.addr %s959, 128
          %s964 = scalar_lea.hbm %s5, %s963
          %s965 = sshll.u32 %s935, 4
          %s966 = int_to_ptr.vmem [resolvable:$true] %s965
          %971 = dma.vmem_to_hbm [thread:$0]  %s966, 768, %s964, %s932, 128, 128, 8
        $region44: #{tpu_custom_call.1} parent=31 // pred_fallthru
          _
      $region32: #{tpu_custom_call.1} parent=5 // pred_fallthru
        _
      %p972 = scmp.le.s32.totalorder 2, %s18
      // Predicated region
      $region45: #{tpu_custom_call.1} parent=5 // pred_check
        %p973 = pneg %p972
      $region46: #{tpu_custom_call.1} parent=5 // pred_check_branch
        %975 = sbr.rel (%p973) target = $region48
      $region47: #{tpu_custom_call.1} parent=5 // pred_region
        %s976 = ssub.s32 %s18, 2
        // Predicated region
        $region49: #{tpu_custom_call.1} parent=47 // pred_check
          %p977 = pneg %p115
        $region50: #{tpu_custom_call.1} parent=47 // pred_check_branch
          %979 = sbr.rel (%p977) target = $region52
        $region51: #{tpu_custom_call.1} parent=47 // pred_region
          %s980 = smul.u32 6, %s24
          %p981 = scmp.lt.s32.totalorder %s980, 11
          %s982 = scalar_select %p981, %s980, 11
          %s983 = smul.addr %s982, 8
          %s984 = scalar_lea.vmem %s3, %s983
        $region52: #{tpu_custom_call.1} parent=47 // pred_fallthru
          _
        // Predicated region
        $region53: #{tpu_custom_call.1} parent=47 // pred_check
          %p985 = pneg %p141
        $region54: #{tpu_custom_call.1} parent=47 // pred_check_branch
          %987 = sbr.rel (%p985) target = $region56
        $region55: #{tpu_custom_call.1} parent=47 // pred_region
          %s988 = sand.u32 %s126, 1
          %s989 = scalar_lea.sflag [#allocation3], %s988
          %s990 = sand.u32 %s126, 1
          %s991 = smul.addr %s990, 48
          %s992 = scalar_lea.vmem [#allocation2], %s991
          %993 = dma.done %s989, 768
        $region56: #{tpu_custom_call.1} parent=47 // pred_fallthru
          _
        // Predicated region
        $region57: #{tpu_custom_call.1} parent=47 // pred_check
          %p994 = pneg %p167
        $region58: #{tpu_custom_call.1} parent=47 // pred_check_branch
          %996 = sbr.rel (%p994) target = $region60
        $region59: #{tpu_custom_call.1} parent=47 // pred_region
          %s997 = sand.u32 %s152, 1
          %s998 = scalar_lea.sflag [#allocation5], %s997
          %s999 = sand.u32 %s152, 1
          %s1000 = smul.addr %s999, 48
          %s1001 = scalar_lea.vmem [#allocation4], %s1000
          %1002 = dma.done %s998, 768
        $region60: #{tpu_custom_call.1} parent=47 // pred_fallthru
          _
      $region48: #{tpu_custom_call.1} parent=5 // pred_fallthru
        _
    $region6: #{tpu_custom_call.1} parent=1 // loop_footer
      %s22 = sadd.s32 1, %s18
    $region7: #{tpu_custom_call.1} parent=1 // loop_footer_branch
      %17 = sbr.rel target = $region3
    $region8: #{tpu_custom_call.1} parent=1 // loop_exit
      _
    %1003 = vsyncpa [#allocation3], 1
    %s1004 = scalar_lea.sflag [#allocation3], 1
    %1005 = vsyncpa %s1004, 1
    %1006 = vsyncpa [#allocation5], 1
    %s1007 = scalar_lea.sflag [#allocation5], 1
    %1008 = vsyncpa %s1007, 1

</llo_original>
